<compile_context>
chip_gen: v6e
topology: v6e:2x2x1
jax: 0.10.0
libtpu: 0.0.40
codegen_flags: <defaults>
</compile_context>

<pallas_src>
import functools

import jax
import jax.numpy as jnp
from jax.experimental import pallas as pl
from jax.experimental.pallas import tpu as pltpu


def _window_msa_kernel(qkv_ref, mask_ref, out_ref, *, num_heads, head_dim, scale):
    """One grid step: S = WB*N fused token rows, all heads.

    qkv_ref : (S, 3*H*D)   mask_ref : (H, S, S) f32   out_ref : (S, H*D)
    """
    H, D = num_heads, head_dim
    HD = H * D

    for h in range(H):  # static unroll; per-head live ranges end at the store
        q = qkv_ref[:, h * D:(h + 1) * D]                     # (S, D), input dtype
        k = qkv_ref[:, HD + h * D:HD + (h + 1) * D]           # (S, D)
        v = qkv_ref[:, 2 * HD + h * D:2 * HD + (h + 1) * D]   # (S, D)

        # scores = scale * (q @ k^T) + block-diagonal mask, accumulated in f32.
        s = jnp.einsum('qd,kd->qk', q, k,
                       preferred_element_type=jnp.float32)    # (S, S) f32
        s = s * scale + mask_ref[h]

        # Numerically-stable softmax over lane-dense S-wide rows.
        s = s - jnp.max(s, axis=-1, keepdims=True)
        p = jnp.exp(s)
        p = p * pl.reciprocal(jnp.sum(p, axis=-1, keepdims=True), approx=True)

        o = jnp.dot(p.astype(v.dtype), v,
                    preferred_element_type=jnp.float32)       # (S, D)
        out_ref[:, h * D:(h + 1) * D] = o.astype(out_ref.dtype)


def _pick_windows_per_block(num_windows, tokens_per_window, target_rows):
    """Largest divisor WB of num_windows with WB * tokens_per_window <= target."""
    best = 1
    for wb in range(1, num_windows + 1):
        if num_windows % wb:
            continue
        if wb * tokens_per_window > max(target_rows, tokens_per_window):
            break
        best = wb
    return best


def window_msa(qkv, mask, *, num_heads, scale, block_rows=256):
    """qkv: [B, N, 3*H*D], mask: [1, H, N, N] -> [B, N, H*D]."""
    B, N, C = qkv.shape
    H = num_heads
    assert C % (3 * H) == 0
    D = C // (3 * H)
    HD = H * D

    WB = _pick_windows_per_block(B, N, block_rows)
    S = WB * N
    # TODO(synk): support window areas where WB*N is not a multiple of 8 (would
    # need 3-D blocks instead of the flat [B*N, C] view).
    assert S % 8 == 0 or S == B * N, (S, B, N)

    # Per-head window mask (broadcast over windows by the torch module).  For
    # WB > 1 build the block-diagonal [H, S, S] mask once here; it stays
    # VMEM-resident in the kernel.  Off-diagonal blocks use a large finite
    # negative value so cross-window probabilities underflow to exactly 0
    # while every softmax row keeps finite entries.
    m = mask.reshape(H, N, N).astype(jnp.float32)
    if WB > 1:
        same_window = jnp.eye(WB, dtype=bool)[None, :, None, :, None]
        m = jnp.where(same_window, m[:, None, :, None, :],
                      jnp.float32(-1e9)).reshape(H, S, S)

    qkv_flat = qkv.reshape(B * N, C)  # contiguous -> free view

    kernel = functools.partial(
        _window_msa_kernel, num_heads=H, head_dim=D, scale=scale
    )

    out = pl.pallas_call(
        kernel,
        out_shape=jax.ShapeDtypeStruct((B * N, HD), qkv.dtype),
        grid_spec=pltpu.PrefetchScalarGridSpec(
            num_scalar_prefetch=0,
            grid=(B // WB,),
            in_specs=[
                # One lane-dense slab of WB windows in the natural qkv layout.
                pl.BlockSpec((S, C), lambda b: (b, 0)),
                # Block-diagonal mask: constant index_map -> fetched once.
                pl.BlockSpec((H, S, S), lambda b: (0, 0, 0)),
            ],
            out_specs=pl.BlockSpec((S, HD), lambda b: (b, 0)),
        ),
        compiler_params=pltpu.CompilerParams(
            dimension_semantics=("parallel",),
        ),
    )(qkv_flat, m)

    return out.reshape(B, N, HD)


def _reference(qkv, mask, *, num_heads, scale):
    B, N, C = qkv.shape
    D = C // num_heads // 3
    qkv_r = qkv.reshape(B, N, 3, num_heads, D).transpose(2, 0, 3, 1, 4)
    q, k, v = qkv_r[0], qkv_r[1], qkv_r[2]
    attn = (q * scale) @ jnp.swapaxes(k, -2, -1) + mask
    attn = jax.nn.softmax(attn, axis=-1)
    return (attn @ v).transpose(0, 2, 1, 3).reshape(B, N, C // 3)


if __name__ == "__main__":
    # Small, module-consistent shapes: B=16 windows, window_size=4 -> N=16,
    # H=4 heads, head dim D=8 -> C = 3*H*D = 96.  block_rows=128 picks WB=8
    # windows fused per step (S=128 lane-dense rows) and 2 grid steps, so both
    # the block-diagonal batching and grid iteration are exercised.
    B, H, D = 16, 4, 8
    window_size = 4
    N = window_size * window_size
    C = 3 * H * D
    scale = float(D) ** -0.5

    key = jax.random.PRNGKey(0)
    k_qkv, k_mask = jax.random.split(key)
    qkv = jax.random.uniform(k_qkv, (B, N, C), dtype=jnp.float32)
    mask = jax.random.uniform(k_mask, (1, H, N, N), dtype=jnp.float32)

    out = window_msa(qkv, mask, num_heads=H, scale=scale, block_rows=128)
    out = jax.block_until_ready(out)

    ref = _reference(qkv, mask, num_heads=H, scale=scale)
    assert out.shape == (B, N, H * D)
    # Tolerance covers the EUP approximate reciprocal in the softmax denominator.
    assert jnp.allclose(out, ref, atol=2e-3, rtol=2e-3), float(
        jnp.max(jnp.abs(out - ref))
    )

    print("KERNEL_OK")
</pallas_src>

<mosaic_0001>
module attributes {stable_mosaic.version = 11 : i64} {
  func.func @_window_msa_kernel(%arg0: i32, %arg1: memref<128x96xf32, #tpu.memory_space<vmem>>, %arg2: memref<4x128x128xf32, #tpu.memory_space<vmem>>, %arg3: memref<128x32xf32, #tpu.memory_space<vmem>>) attributes {dimension_semantics = [#tpu.dimension_semantics<parallel>], iteration_bounds = array<i64: 2>, scalar_prefetch = 0 : i64, scratch_operands = 0 : i64, tpu.core_type = #tpu.core_type<tc>, window_params = [{transform_indices = @transform_0, window_bounds = array<i64: 128, 96>}, {pipeline_mode = #tpu.pipeline_mode<synchronous>, transform_indices = @transform_1, window_bounds = array<i64: 4, 128, 128>}, {transform_indices = @transform_2, window_bounds = array<i64: 128, 32>}]} {
    %c0 = arith.constant 0 : index
    %c0_0 = arith.constant 0 : index
    %0 = vector.load %arg1[%c0, %c0_0] : memref<128x96xf32, #tpu.memory_space<vmem>>, vector<128x8xf32>
    %c0_1 = arith.constant 0 : index
    %c32 = arith.constant 32 : index
    %1 = vector.load %arg1[%c0_1, %c32] : memref<128x96xf32, #tpu.memory_space<vmem>>, vector<128x8xf32>
    %c0_2 = arith.constant 0 : index
    %c64 = arith.constant 64 : index
    %2 = vector.load %arg1[%c0_2, %c64] : memref<128x96xf32, #tpu.memory_space<vmem>>, vector<128x8xf32>
    "tpu.trace_start"() <{level = 10 : i32, message = "qd,kd->qk"}> : () -> ()
    %cst = arith.constant dense<0.000000e+00> : vector<128x128xf32>
    %3 = tpu.matmul %0, %1, %cst {dimension_numbers = #tpu.dot_dimension_numbers<[1], [1], [0], [0], [0, 0, 1, 0], [], []>} : vector<128x8xf32>, vector<128x8xf32>, vector<128x128xf32> -> vector<128x128xf32>
    "tpu.trace_stop"() : () -> ()
    %cst_3 = arith.constant 0.353553385 : f32
    %4 = vector.broadcast %cst_3 : f32 to vector<128x128xf32>
    %5 = arith.mulf %3, %4 : vector<128x128xf32>
    %c0_4 = arith.constant 0 : index
    %c0_5 = arith.constant 0 : index
    %c0_6 = arith.constant 0 : index
    %6 = vector.load %arg2[%c0_4, %c0_5, %c0_6] : memref<4x128x128xf32, #tpu.memory_space<vmem>>, vector<1x128x128xf32>
    %7 = vector.shape_cast %6 : vector<1x128x128xf32> to vector<128x128xf32>
    %8 = arith.addf %5, %7 : vector<128x128xf32>
    %cst_7 = arith.constant dense<0xFF800000> : vector<128xf32>
    %9 = vector.multi_reduction <maximumf>, %8, %cst_7 [1] : vector<128x128xf32> to vector<128xf32>
    %10 = vector.shape_cast %9 : vector<128xf32> to vector<128x1xf32>
    %11 = vector.broadcast %10 : vector<128x1xf32> to vector<128x128xf32>
    %12 = arith.subf %8, %11 : vector<128x128xf32>
    %13 = math.exp %12 : vector<128x128xf32>
    %cst_8 = arith.constant dense<0.000000e+00> : vector<128xf32>
    %14 = vector.multi_reduction <add>, %13, %cst_8 [1] : vector<128x128xf32> to vector<128xf32>
    %15 = vector.shape_cast %14 : vector<128xf32> to vector<128x1xf32>
    %16 = tpu.reciprocal %15 {approx = true} : vector<128x1xf32> -> vector<128x1xf32>
    %17 = vector.broadcast %16 : vector<128x1xf32> to vector<128x128xf32>
    %18 = arith.mulf %13, %17 : vector<128x128xf32>
    %cst_9 = arith.constant dense<0.000000e+00> : vector<128x8xf32>
    %19 = tpu.matmul %18, %2, %cst_9 {dimension_numbers = #tpu.dot_dimension_numbers<[1], [0], [0], [1], [0, 0, 1, 1], [], []>} : vector<128x128xf32>, vector<128x8xf32>, vector<128x8xf32> -> vector<128x8xf32>
    %c0_10 = arith.constant 0 : index
    %c0_11 = arith.constant 0 : index
    %20 = vector.load %arg3[%c0_10, %c0_11] : memref<128x32xf32, #tpu.memory_space<vmem>>, vector<128x8xf32>
    tpu.vector_store %arg3[%c0_10, %c0_11], %19 {strides = array<i32>} : memref<128x32xf32, #tpu.memory_space<vmem>>, vector<128x8xf32>,
    %c0_12 = arith.constant 0 : index
    %c8 = arith.constant 8 : index
    %21 = vector.load %arg1[%c0_12, %c8] : memref<128x96xf32, #tpu.memory_space<vmem>>, vector<128x8xf32>
    %c0_13 = arith.constant 0 : index
    %c40 = arith.constant 40 : index
    %22 = vector.load %arg1[%c0_13, %c40] : memref<128x96xf32, #tpu.memory_space<vmem>>, vector<128x8xf32>
    %c0_14 = arith.constant 0 : index
    %c72 = arith.constant 72 : index
    %23 = vector.load %arg1[%c0_14, %c72] : memref<128x96xf32, #tpu.memory_space<vmem>>, vector<128x8xf32>
    "tpu.trace_start"() <{level = 10 : i32, message = "qd,kd->qk"}> : () -> ()
    %cst_15 = arith.constant dense<0.000000e+00> : vector<128x128xf32>
    %24 = tpu.matmul %21, %22, %cst_15 {dimension_numbers = #tpu.dot_dimension_numbers<[1], [1], [0], [0], [0, 0, 1, 0], [], []>} : vector<128x8xf32>, vector<128x8xf32>, vector<128x128xf32> -> vector<128x128xf32>
    "tpu.trace_stop"() : () -> ()
    %cst_16 = arith.constant 0.353553385 : f32
    %25 = vector.broadcast %cst_16 : f32 to vector<128x128xf32>
    %26 = arith.mulf %24, %25 : vector<128x128xf32>
    %c1 = arith.constant 1 : index
    %c0_17 = arith.constant 0 : index
    %c0_18 = arith.constant 0 : index
    %27 = vector.load %arg2[%c1, %c0_17, %c0_18] : memref<4x128x128xf32, #tpu.memory_space<vmem>>, vector<1x128x128xf32>
    %28 = vector.shape_cast %27 : vector<1x128x128xf32> to vector<128x128xf32>
    %29 = arith.addf %26, %28 : vector<128x128xf32>
    %cst_19 = arith.constant dense<0xFF800000> : vector<128xf32>
    %30 = vector.multi_reduction <maximumf>, %29, %cst_19 [1] : vector<128x128xf32> to vector<128xf32>
    %31 = vector.shape_cast %30 : vector<128xf32> to vector<128x1xf32>
    %32 = vector.broadcast %31 : vector<128x1xf32> to vector<128x128xf32>
    %33 = arith.subf %29, %32 : vector<128x128xf32>
    %34 = math.exp %33 : vector<128x128xf32>
    %cst_20 = arith.constant dense<0.000000e+00> : vector<128xf32>
    %35 = vector.multi_reduction <add>, %34, %cst_20 [1] : vector<128x128xf32> to vector<128xf32>
    %36 = vector.shape_cast %35 : vector<128xf32> to vector<128x1xf32>
    %37 = tpu.reciprocal %36 {approx = true} : vector<128x1xf32> -> vector<128x1xf32>
    %38 = vector.broadcast %37 : vector<128x1xf32> to vector<128x128xf32>
    %39 = arith.mulf %34, %38 : vector<128x128xf32>
    %cst_21 = arith.constant dense<0.000000e+00> : vector<128x8xf32>
    %40 = tpu.matmul %39, %23, %cst_21 {dimension_numbers = #tpu.dot_dimension_numbers<[1], [0], [0], [1], [0, 0, 1, 1], [], []>} : vector<128x128xf32>, vector<128x8xf32>, vector<128x8xf32> -> vector<128x8xf32>
    %c0_22 = arith.constant 0 : index
    %c8_23 = arith.constant 8 : index
    %41 = vector.load %arg3[%c0_22, %c8_23] : memref<128x32xf32, #tpu.memory_space<vmem>>, vector<128x8xf32>
    tpu.vector_store %arg3[%c0_22, %c8_23], %40 {strides = array<i32>} : memref<128x32xf32, #tpu.memory_space<vmem>>, vector<128x8xf32>,
    %c0_24 = arith.constant 0 : index
    %c16 = arith.constant 16 : index
    %42 = vector.load %arg1[%c0_24, %c16] : memref<128x96xf32, #tpu.memory_space<vmem>>, vector<128x8xf32>
    %c0_25 = arith.constant 0 : index
    %c48 = arith.constant 48 : index
    %43 = vector.load %arg1[%c0_25, %c48] : memref<128x96xf32, #tpu.memory_space<vmem>>, vector<128x8xf32>
    %c0_26 = arith.constant 0 : index
    %c80 = arith.constant 80 : index
    %44 = vector.load %arg1[%c0_26, %c80] : memref<128x96xf32, #tpu.memory_space<vmem>>, vector<128x8xf32>
    "tpu.trace_start"() <{level = 10 : i32, message = "qd,kd->qk"}> : () -> ()
    %cst_27 = arith.constant dense<0.000000e+00> : vector<128x128xf32>
    %45 = tpu.matmul %42, %43, %cst_27 {dimension_numbers = #tpu.dot_dimension_numbers<[1], [1], [0], [0], [0, 0, 1, 0], [], []>} : vector<128x8xf32>, vector<128x8xf32>, vector<128x128xf32> -> vector<128x128xf32>
    "tpu.trace_stop"() : () -> ()
    %cst_28 = arith.constant 0.353553385 : f32
    %46 = vector.broadcast %cst_28 : f32 to vector<128x128xf32>
    %47 = arith.mulf %45, %46 : vector<128x128xf32>
    %c2 = arith.constant 2 : index
    %c0_29 = arith.constant 0 : index
    %c0_30 = arith.constant 0 : index
    %48 = vector.load %arg2[%c2, %c0_29, %c0_30] : memref<4x128x128xf32, #tpu.memory_space<vmem>>, vector<1x128x128xf32>
    %49 = vector.shape_cast %48 : vector<1x128x128xf32> to vector<128x128xf32>
    %50 = arith.addf %47, %49 : vector<128x128xf32>
    %cst_31 = arith.constant dense<0xFF800000> : vector<128xf32>
    %51 = vector.multi_reduction <maximumf>, %50, %cst_31 [1] : vector<128x128xf32> to vector<128xf32>
    %52 = vector.shape_cast %51 : vector<128xf32> to vector<128x1xf32>
    %53 = vector.broadcast %52 : vector<128x1xf32> to vector<128x128xf32>
    %54 = arith.subf %50, %53 : vector<128x128xf32>
    %55 = math.exp %54 : vector<128x128xf32>
    %cst_32 = arith.constant dense<0.000000e+00> : vector<128xf32>
    %56 = vector.multi_reduction <add>, %55, %cst_32 [1] : vector<128x128xf32> to vector<128xf32>
    %57 = vector.shape_cast %56 : vector<128xf32> to vector<128x1xf32>
    %58 = tpu.reciprocal %57 {approx = true} : vector<128x1xf32> -> vector<128x1xf32>
    %59 = vector.broadcast %58 : vector<128x1xf32> to vector<128x128xf32>
    %60 = arith.mulf %55, %59 : vector<128x128xf32>
    %cst_33 = arith.constant dense<0.000000e+00> : vector<128x8xf32>
    %61 = tpu.matmul %60, %44, %cst_33 {dimension_numbers = #tpu.dot_dimension_numbers<[1], [0], [0], [1], [0, 0, 1, 1], [], []>} : vector<128x128xf32>, vector<128x8xf32>, vector<128x8xf32> -> vector<128x8xf32>
    %c0_34 = arith.constant 0 : index
    %c16_35 = arith.constant 16 : index
    %62 = vector.load %arg3[%c0_34, %c16_35] : memref<128x32xf32, #tpu.memory_space<vmem>>, vector<128x8xf32>
    tpu.vector_store %arg3[%c0_34, %c16_35], %61 {strides = array<i32>} : memref<128x32xf32, #tpu.memory_space<vmem>>, vector<128x8xf32>,
    %c0_36 = arith.constant 0 : index
    %c24 = arith.constant 24 : index
    %63 = vector.load %arg1[%c0_36, %c24] : memref<128x96xf32, #tpu.memory_space<vmem>>, vector<128x8xf32>
    %c0_37 = arith.constant 0 : index
    %c56 = arith.constant 56 : index
    %64 = vector.load %arg1[%c0_37, %c56] : memref<128x96xf32, #tpu.memory_space<vmem>>, vector<128x8xf32>
    %c0_38 = arith.constant 0 : index
    %c88 = arith.constant 88 : index
    %65 = vector.load %arg1[%c0_38, %c88] : memref<128x96xf32, #tpu.memory_space<vmem>>, vector<128x8xf32>
    "tpu.trace_start"() <{level = 10 : i32, message = "qd,kd->qk"}> : () -> ()
    %cst_39 = arith.constant dense<0.000000e+00> : vector<128x128xf32>
    %66 = tpu.matmul %63, %64, %cst_39 {dimension_numbers = #tpu.dot_dimension_numbers<[1], [1], [0], [0], [0, 0, 1, 0], [], []>} : vector<128x8xf32>, vector<128x8xf32>, vector<128x128xf32> -> vector<128x128xf32>
    "tpu.trace_stop"() : () -> ()
    %cst_40 = arith.constant 0.353553385 : f32
    %67 = vector.broadcast %cst_40 : f32 to vector<128x128xf32>
    %68 = arith.mulf %66, %67 : vector<128x128xf32>
    %c3 = arith.constant 3 : index
    %c0_41 = arith.constant 0 : index
    %c0_42 = arith.constant 0 : index
    %69 = vector.load %arg2[%c3, %c0_41, %c0_42] : memref<4x128x128xf32, #tpu.memory_space<vmem>>, vector<1x128x128xf32>
    %70 = vector.shape_cast %69 : vector<1x128x128xf32> to vector<128x128xf32>
    %71 = arith.addf %68, %70 : vector<128x128xf32>
    %cst_43 = arith.constant dense<0xFF800000> : vector<128xf32>
    %72 = vector.multi_reduction <maximumf>, %71, %cst_43 [1] : vector<128x128xf32> to vector<128xf32>
    %73 = vector.shape_cast %72 : vector<128xf32> to vector<128x1xf32>
    %74 = vector.broadcast %73 : vector<128x1xf32> to vector<128x128xf32>
    %75 = arith.subf %71, %74 : vector<128x128xf32>
    %76 = math.exp %75 : vector<128x128xf32>
    %cst_44 = arith.constant dense<0.000000e+00> : vector<128xf32>
    %77 = vector.multi_reduction <add>, %76, %cst_44 [1] : vector<128x128xf32> to vector<128xf32>
    %78 = vector.shape_cast %77 : vector<128xf32> to vector<128x1xf32>
    %79 = tpu.reciprocal %78 {approx = true} : vector<128x1xf32> -> vector<128x1xf32>
    %80 = vector.broadcast %79 : vector<128x1xf32> to vector<128x128xf32>
    %81 = arith.mulf %76, %80 : vector<128x128xf32>
    %cst_45 = arith.constant dense<0.000000e+00> : vector<128x8xf32>
    %82 = tpu.matmul %81, %65, %cst_45 {dimension_numbers = #tpu.dot_dimension_numbers<[1], [0], [0], [1], [0, 0, 1, 1], [], []>} : vector<128x128xf32>, vector<128x8xf32>, vector<128x8xf32> -> vector<128x8xf32>
    %c0_46 = arith.constant 0 : index
    %c24_47 = arith.constant 24 : index
    %83 = vector.load %arg3[%c0_46, %c24_47] : memref<128x32xf32, #tpu.memory_space<vmem>>, vector<128x8xf32>
    tpu.vector_store %arg3[%c0_46, %c24_47], %82 {strides = array<i32>} : memref<128x32xf32, #tpu.memory_space<vmem>>, vector<128x8xf32>,
    return
  }
  func.func @transform_0(%arg0: i32) -> (i32, i32) {
    %c0_i32 = arith.constant 0 : i32
    %c0_i32_0 = arith.constant 0 : i32
    return %arg0, %c0_i32 : i32, i32
  }
  func.func @transform_1(%arg0: i32) -> (i32, i32, i32) {
    %c0_i32 = arith.constant 0 : i32
    %c0_i32_0 = arith.constant 0 : i32
    %c0_i32_1 = arith.constant 0 : i32
    %c0_i32_2 = arith.constant 0 : i32
    return %c0_i32, %c0_i32_0, %c0_i32_1 : i32, i32, i32
  }
  func.func @transform_2(%arg0: i32) -> (i32, i32) {
    %c0_i32 = arith.constant 0 : i32
    %c0_i32_0 = arith.constant 0 : i32
    return %arg0, %c0_i32 : i32, i32
  }
}

</mosaic_0001>

<llo_original>
// kernel: tpu_custom_call.1
$region0: #{tpu_custom_call.1}
  #allocation0 [shape = 'u32[]', space=smem, size = 0x4, offset = 0x4, fixed_abs, tag = 'smem constant byte address 0x4 - core index']
  #allocation1 [shape = 'u32[144,128]{1,0:T(1,128)}', space=vmem, size = 0x12000, scoped, tag = 'internal scratch']
  %s0 = inlined_call_operand.vmem [shape: f32[256,96], index: 0, kind: input, shape index: {}]
  %s1 = inlined_call_operand.hbm [shape: f32[4,128,128], index: 1, kind: input, shape index: {}]
  %s2 = inlined_call_operand.vmem [shape: f32[256,32], index: 2, kind: output, shape index: {}]
  %s3 = sld [smem:[#allocation0]]
  $region45: #{tpu_custom_call.1} parent=0
    _
  %s5 = ssub.s32 1, %s3
  %s6 = scalar_select 0, %s5, %s3
  $region1: #{tpu_custom_call.1} parent=0
    #allocation2 [shape = 'u8[262144]{0}', space=vmem, size = 0x40000, scoped, tag = 'input window, operand 1, single buffered']
    #allocation3 [shape = 's32[2]{0}', space=sflag, size = 0x8, scoped, tag = 'scoped memory for tpu_custom_call.1']
    %7 = vsyncpa [#allocation3], 0
    loop: start=0, step=1, limit=4
    $region2: #{tpu_custom_call.1} parent=1 // loop_pre_header
      _
    $region3: #{tpu_custom_call.1} parent=1 // loop_header
      %s9 = sphi 0, %s13
      %p10 = scmp.ge.s32.totalorder %s9, 4
      %s19 = sphi 0, %s21
      %s22 = sphi 0, %s19
      %s23 = sphi 0, %s22
      %s39 = sphi 0, %s23
      %s43 = sphi 0, %s43
      %s45 = sphi 0, %s43
      %s46 = sphi 0, %s45
      %s60 = sphi 0, %s46
      %s66 = sphi 0, %s68
      %s69 = sphi 0, %s66
      %s70 = sphi 0, %s69
      %s86 = sphi 0, %s70
    $region4: #{tpu_custom_call.1} parent=1 // loop_header_branch
      %12 = sbr.rel (%p10) target = $region8
    $region5: #{tpu_custom_call.1} parent=1 // loop_body
      %s14 = ssub.s32 %s9, 1
      %s15 = ssub.s32 %s9, 2
      %s16 = sadd.s32 %s9, 1
      %s17 = ssub.s32 %s9, %s16
      %p18 = scmp.eq.s32.totalorder %s17, 0
      %s20 = sadd.s32 %s19, 1
      %s21 = scalar_select %p18, %s19, %s20
      %p24 = pneg %p18
      %p25 = scmp.eq.s32.totalorder %s9, 1
      %p26 = por %p24, %p25
      %p27 = scmp.ne.s32.totalorder %s19, %s22
      %p28 = scmp.eq.s32.totalorder %s9, 0
      %p29 = por %p27, %p28
      %p30 = scmp.ne.s32.totalorder %s19, %s22
      %p31 = scmp.eq.s32.totalorder %s14, 1
      %p32 = por %p30, %p31
      %p33 = scmp.ne.s32.totalorder %s22, %s23
      %p34 = scmp.eq.s32.totalorder %s14, 0
      %p35 = por %p33, %p34
      %p36 = scmp.ne.s32.totalorder %s22, %s23
      %p37 = scmp.eq.s32.totalorder %s15, 1
      %p38 = por %p36, %p37
      %p40 = scmp.ne.s32.totalorder %s23, %s39
      %p41 = scmp.eq.s32.totalorder %s15, 0
      %p42 = por %p40, %p41
      %s44 = sadd.s32 %s43, 1
      %p47 = scmp.eq.s32.totalorder %s9, 1
      %p48 = scmp.ne.s32.totalorder %s43, %s45
      %p49 = scmp.eq.s32.totalorder %s9, 0
      %p50 = por %p48, %p49
      %p51 = scmp.ne.s32.totalorder %s43, %s45
      %p52 = scmp.eq.s32.totalorder %s14, 1
      %p53 = por %p51, %p52
      %p54 = scmp.ne.s32.totalorder %s45, %s46
      %p55 = scmp.eq.s32.totalorder %s14, 0
      %p56 = por %p54, %p55
      %p57 = scmp.ne.s32.totalorder %s45, %s46
      %p58 = scmp.eq.s32.totalorder %s15, 1
      %p59 = por %p57, %p58
      %p61 = scmp.ne.s32.totalorder %s46, %s60
      %p62 = scmp.eq.s32.totalorder %s15, 0
      %p63 = por %p61, %p62
      %s64 = ssub.s32 %s9, %s16
      %p65 = scmp.eq.s32.totalorder %s64, 0
      %s67 = sadd.s32 %s66, 1
      %s68 = scalar_select %p65, %s66, %s67
      %p71 = pneg %p65
      %p72 = scmp.eq.s32.totalorder %s9, 1
      %p73 = por %p71, %p72
      %p74 = scmp.ne.s32.totalorder %s66, %s69
      %p75 = scmp.eq.s32.totalorder %s9, 0
      %p76 = por %p74, %p75
      %p77 = scmp.ne.s32.totalorder %s66, %s69
      %p78 = scmp.eq.s32.totalorder %s14, 1
      %p79 = por %p77, %p78
      %p80 = scmp.ne.s32.totalorder %s69, %s70
      %p81 = scmp.eq.s32.totalorder %s14, 0
      %p82 = por %p80, %p81
      %p83 = scmp.ne.s32.totalorder %s69, %s70
      %p84 = scmp.eq.s32.totalorder %s15, 1
      %p85 = por %p83, %p84
      %p87 = scmp.ne.s32.totalorder %s70, %s86
      %p88 = scmp.eq.s32.totalorder %s15, 0
      %p89 = por %p87, %p88
      %p90 = scmp.le.s32.totalorder 1, %s9
      %p91 = scmp.lt.s32.totalorder %s9, 3
      %p92 = pnand %p90, %p91
      %p93 = pneg %p92
      // Predicated region
      $region9: #{tpu_custom_call.1} parent=5 // pred_check
        _
      $region10: #{tpu_custom_call.1} parent=5 // pred_check_branch
        %95 = sbr.rel (%p92) target = $region12
      $region11: #{tpu_custom_call.1} parent=5 // pred_region
        %s96 = ssub.s32 %s9, 1
        // Predicated region
        $region13: #{tpu_custom_call.1} parent=11 // pred_check
          %p97 = pneg %p56
        $region14: #{tpu_custom_call.1} parent=11 // pred_check_branch
          %99 = sbr.rel (%p97) target = $region16
        $region15: #{tpu_custom_call.1} parent=11 // pred_region
          %s101 = ssub.s32 8192, 8192
          %102 = vsyncadd [#allocation3], %s101
          %s103 = sshll.u32 [#allocation2], 4
          %s104 = int_to_ptr.vmem [resolvable:$true] %s103
          %109 = dma.hbm_to_vmem [thread:$0]  %s1, 8192, %s104, [#allocation3], 128, 128, 8
        $region16: #{tpu_custom_call.1} parent=11 // pred_fallthru
          _
      $region12: #{tpu_custom_call.1} parent=5 // pred_fallthru
        _
      %p110 = scmp.lt.s32.totalorder %s9, 2
      // Predicated region
      $region17: #{tpu_custom_call.1} parent=5 // pred_check
        %p111 = pneg %p110
      $region18: #{tpu_custom_call.1} parent=5 // pred_check_branch
        %113 = sbr.rel (%p111) target = $region20
      $region19: #{tpu_custom_call.1} parent=5 // pred_region
        // Predicated region
        $region21: #{tpu_custom_call.1} parent=19 // pred_check
          %p114 = pneg %p29
        $region22: #{tpu_custom_call.1} parent=19 // pred_check_branch
          %116 = sbr.rel (%p114) target = $region24
        $region23: #{tpu_custom_call.1} parent=19 // pred_region
          %s117 = smul.u32 16, %s9
          %p118 = scmp.lt.s32.totalorder %s117, 31
          %s119 = scalar_select %p118, %s117, 31
          %s120 = smul.addr %s119, 8
          %s121 = scalar_lea.vmem %s0, %s120
          %s122 = smul.u32 16, %s9
        $region24: #{tpu_custom_call.1} parent=19 // pred_fallthru
          _
      $region20: #{tpu_custom_call.1} parent=5 // pred_fallthru
        _
      %p123 = scmp.le.s32.totalorder 1, %s9
      %p124 = scmp.lt.s32.totalorder %s9, 3
      %p125 = pnand %p123, %p124
      %p126 = pneg %p125
      // Predicated region
      $region25: #{tpu_custom_call.1} parent=5 // pred_check
        _
      $region26: #{tpu_custom_call.1} parent=5 // pred_check_branch
        %128 = sbr.rel (%p125) target = $region28
      $region27: #{tpu_custom_call.1} parent=5 // pred_region
        %s129 = ssub.s32 %s9, 1
        // Predicated region
        $region29: #{tpu_custom_call.1} parent=27 // pred_check
          %p130 = pneg %p56
        $region30: #{tpu_custom_call.1} parent=27 // pred_check_branch
          %132 = sbr.rel (%p130) target = $region32
        $region31: #{tpu_custom_call.1} parent=27 // pred_region
          %133 = dma.done [#allocation3], 8192
        $region32: #{tpu_custom_call.1} parent=27 // pred_fallthru
          _
        %s134 = smul.u32 16, %s14
        %p135 = scmp.lt.s32.totalorder %s134, 31
        %s136 = scalar_select %p135, %s134, 31
        %s137 = smul.addr %s136, 8
        %s138 = scalar_lea.vmem %s0, %s137
        %p139 = pneg %p35
        %p140 = pneg %p32
        %p141 = pneg %p56
        %p142 = pneg %p53
        %p143 = pneg %p82
        %p144 = pneg %p79
        %s145 = smul.u32 16, %s14
        %p146 = scmp.lt.s32.totalorder %s145, 31
        %s147 = scalar_select %p146, %s145, 31
        %s148 = smul.addr %s147, 8
        %s149 = scalar_lea.vmem %s2, %s148
        %s150 = smul.u32 16, %s14
        %p151 = scmp.lt.s32.totalorder %s150, 31
        %s152 = scalar_select %p151, %s150, 31
        %s153 = smul.addr %s152, 8
        %s154 = scalar_lea.vmem %s0, %s153
        %s155 = smul.u32 16, %s14
        %s156 = smul.u32 16, %s14
        %p157 = scmp.lt.s32.totalorder %s156, 31
        %s158 = scalar_select %p157, %s156, 31
        %s159 = smul.addr %s158, 8
        %s160 = scalar_lea.vmem %s2, %s159
        %s161 = smul.u32 16, %s14
        %v162 = vld [vmem:[%s154] sm:$0xff]
        %v163 = vld [vmem:[%s154 + $0x8] sm:$0xff]
        %v164 = vld [vmem:[%s154 + $0x10] sm:$0xff]
        %v165 = vld [vmem:[%s154 + $0x18] sm:$0xff]
        %v166 = vld [vmem:[%s154 + $0x20] sm:$0xff]
        %v167 = vld [vmem:[%s154 + $0x28] sm:$0xff]
        %v168 = vld [vmem:[%s154 + $0x30] sm:$0xff]
        %v169 = vld [vmem:[%s154 + $0x38] sm:$0xff]
        %v170 = vld [vmem:[%s154 + $0x40] sm:$0xff]
        %v171 = vld [vmem:[%s154 + $0x48] sm:$0xff]
        %v172 = vld [vmem:[%s154 + $0x50] sm:$0xff]
        %v173 = vld [vmem:[%s154 + $0x58] sm:$0xff]
        %v174 = vld [vmem:[%s154 + $0x60] sm:$0xff]
        %v175 = vld [vmem:[%s154 + $0x68] sm:$0xff]
        %v176 = vld [vmem:[%s154 + $0x70] sm:$0xff]
        %v177 = vld [vmem:[%s154 + $0x78] sm:$0xff]
        %194 = vrot.lane.b32.xlu0 %v162, 96
        %v195 = vpop.permute.xlu0 %194
        %196 = vrot.lane.b32.xlu0 %v163, 96
        %v197 = vpop.permute.xlu0 %196
        %198 = vrot.lane.b32.xlu0 %v164, 96
        %v199 = vpop.permute.xlu0 %198
        %200 = vrot.lane.b32.xlu0 %v165, 96
        %v201 = vpop.permute.xlu0 %200
        %202 = vrot.lane.b32.xlu0 %v166, 96
        %v203 = vpop.permute.xlu0 %202
        %204 = vrot.lane.b32.xlu0 %v167, 96
        %v205 = vpop.permute.xlu0 %204
        %206 = vrot.lane.b32.xlu0 %v168, 96
        %v207 = vpop.permute.xlu0 %206
        %208 = vrot.lane.b32.xlu0 %v169, 96
        %v209 = vpop.permute.xlu0 %208
        %210 = vrot.lane.b32.xlu0 %v170, 96
        %v211 = vpop.permute.xlu0 %210
        %212 = vrot.lane.b32.xlu0 %v171, 96
        %v213 = vpop.permute.xlu0 %212
        %214 = vrot.lane.b32.xlu0 %v172, 96
        %v215 = vpop.permute.xlu0 %214
        %216 = vrot.lane.b32.xlu0 %v173, 96
        %v217 = vpop.permute.xlu0 %216
        %218 = vrot.lane.b32.xlu0 %v174, 96
        %v219 = vpop.permute.xlu0 %218
        %220 = vrot.lane.b32.xlu0 %v175, 96
        %v221 = vpop.permute.xlu0 %220
        %222 = vrot.lane.b32.xlu0 %v176, 96
        %v223 = vpop.permute.xlu0 %222
        %224 = vrot.lane.b32.xlu0 %v177, 96
        %v225 = vpop.permute.xlu0 %224
        %vm226 = vcmask 64512
        %v227 = vsel %vm226, %v162, 0
        %v229 = vsel %vm226, %v163, 0
        %v231 = vsel %vm226, %v164, 0
        %v233 = vsel %vm226, %v165, 0
        %v235 = vsel %vm226, %v166, 0
        %v237 = vsel %vm226, %v167, 0
        %v239 = vsel %vm226, %v168, 0
        %v241 = vsel %vm226, %v169, 0
        %v243 = vsel %vm226, %v170, 0
        %v245 = vsel %vm226, %v171, 0
        %v247 = vsel %vm226, %v172, 0
        %v249 = vsel %vm226, %v173, 0
        %v251 = vsel %vm226, %v174, 0
        %v253 = vsel %vm226, %v175, 0
        %v255 = vsel %vm226, %v176, 0
        %v257 = vsel %vm226, %v177, 0
        %v259 = vsel %vm226, %v195, 0
        %v261 = vsel %vm226, %v197, 0
        %v263 = vsel %vm226, %v199, 0
        %v265 = vsel %vm226, %v201, 0
        %v267 = vsel %vm226, %v203, 0
        %v269 = vsel %vm226, %v205, 0
        %v271 = vsel %vm226, %v207, 0
        %v273 = vsel %vm226, %v209, 0
        %v275 = vsel %vm226, %v211, 0
        %v277 = vsel %vm226, %v213, 0
        %v279 = vsel %vm226, %v215, 0
        %v281 = vsel %vm226, %v217, 0
        %v283 = vsel %vm226, %v219, 0
        %v285 = vsel %vm226, %v221, 0
        %v287 = vsel %vm226, %v223, 0
        %v289 = vsel %vm226, %v225, 0
        %291 = vmatprep.subr.mxu0 0.0
        %292 = vmatpush1.xpose.msra.mxu0 %v289
        %293 = vmatprep.subr.mxu0 0.0
        %294 = vmatpush1.xpose.msra.mxu0 %v287
        %295 = vmatprep.subr.mxu0 0.0
        %296 = vmatpush1.xpose.msra.mxu0 %v285
        %297 = vmatprep.subr.mxu0 0.0
        %298 = vmatpush1.xpose.msra.mxu0 %v283
        %299 = vmatprep.subr.mxu0 0.0
        %300 = vmatpush1.xpose.msra.mxu0 %v281
        %301 = vmatprep.subr.mxu0 0.0
        %302 = vmatpush1.xpose.msra.mxu0 %v279
        %303 = vmatprep.subr.mxu0 0.0
        %304 = vmatpush1.xpose.msra.mxu0 %v277
        %305 = vmatprep.subr.mxu0 0.0
        %306 = vmatpush1.xpose.msra.mxu0 %v275
        %307 = vmatprep.subr.mxu0 0.0
        %308 = vmatpush1.xpose.msra.mxu0 %v273
        %309 = vmatprep.subr.mxu0 0.0
        %310 = vmatpush1.xpose.msra.mxu0 %v271
        %311 = vmatprep.subr.mxu0 0.0
        %312 = vmatpush1.xpose.msra.mxu0 %v269
        %313 = vmatprep.subr.mxu0 0.0
        %314 = vmatpush1.xpose.msra.mxu0 %v267
        %315 = vmatprep.subr.mxu0 0.0
        %316 = vmatpush1.xpose.msra.mxu0 %v265
        %317 = vmatprep.subr.mxu0 0.0
        %318 = vmatpush1.xpose.msra.mxu0 %v263
        %319 = vmatprep.subr.mxu0 0.0
        %320 = vmatpush1.xpose.msra.mxu0 %v261
        %321 = vmatprep.subr.mxu0 0.0
        %322 = vmatpush1.xpose.msra.mxu0 %v259
        %323 = vmatprep.subr.mxu0 0.0
        %324 = vmatpush2.xpose.msra.mxu0 0.0
        %325 = vmatprep.subr.mxu0 0.0
        %326 = vmatpush2.xpose.msra.mxu0 0.0
        %327 = vmatprep.subr.mxu0 0.0
        %328 = vmatpush2.xpose.msra.mxu0 0.0
        %329 = vmatprep.subr.mxu0 0.0
        %330 = vmatpush2.xpose.msra.mxu0 0.0
        %331 = vmatprep.subr.mxu0 0.0
        %332 = vmatpush2.xpose.msra.mxu0 0.0
        %333 = vmatprep.subr.mxu0 0.0
        %334 = vmatpush2.xpose.msra.mxu0 0.0
        %335 = vmatprep.subr.mxu0 0.0
        %336 = vmatpush2.xpose.msra.mxu0 0.0
        %337 = vmatprep.subr.mxu0 0.0
        %338 = vmatpush2.xpose.msra.mxu0 0.0
        %339 = vmatprep.subr.mxu0 0.0
        %340 = vmatpush2.xpose.msra.mxu0 0.0
        %341 = vmatprep.subr.mxu0 0.0
        %342 = vmatpush2.xpose.msra.mxu0 0.0
        %343 = vmatprep.subr.mxu0 0.0
        %344 = vmatpush2.xpose.msra.mxu0 0.0
        %345 = vmatprep.subr.mxu0 0.0
        %346 = vmatpush2.xpose.msra.mxu0 0.0
        %347 = vmatprep.subr.mxu0 0.0
        %348 = vmatpush2.xpose.msra.mxu0 0.0
        %349 = vmatprep.subr.mxu0 0.0
        %350 = vmatpush2.xpose.msra.mxu0 0.0
        %351 = vmatprep.subr.mxu0 0.0
        %352 = vmatpush2.xpose.msra.mxu0 0.0
        %353 = vmatprep.subr.mxu0 0.0
        %354 = vmatpush2.xpose.msra.mxu0 0.0
        %355 = vmatprep.mubr.f32.mxu0 0.0
        %356 = vmatmul.mubr.f32.gmra.mxu0 %v227
        %v357 = vpop.f32.mrf.mxu0
        %v358 = vadd.f32 0.0, %v357
        %v359 = vpop.f32.mrf.mxu0
        %360 = vmatprep.mubr.f32.mxu0 0.0
        %361 = vmatmul.mubr.f32.gmra.mxu0 %v229
        %v362 = vpop.f32.mrf.mxu0
        %v363 = vadd.f32 0.0, %v362
        %v364 = vpop.f32.mrf.mxu0
        %365 = vmatprep.mubr.f32.mxu0 0.0
        %366 = vmatmul.mubr.f32.gmra.mxu0 %v231
        %v367 = vpop.f32.mrf.mxu0
        %v368 = vadd.f32 0.0, %v367
        %v369 = vpop.f32.mrf.mxu0
        %370 = vmatprep.mubr.f32.mxu0 0.0
        %371 = vmatmul.mubr.f32.gmra.mxu0 %v233
        %v372 = vpop.f32.mrf.mxu0
        %v373 = vadd.f32 0.0, %v372
        %v374 = vpop.f32.mrf.mxu0
        %375 = vmatprep.mubr.f32.mxu0 0.0
        %376 = vmatmul.mubr.f32.gmra.mxu0 %v235
        %v377 = vpop.f32.mrf.mxu0
        %v378 = vadd.f32 0.0, %v377
        %v379 = vpop.f32.mrf.mxu0
        %380 = vmatprep.mubr.f32.mxu0 0.0
        %381 = vmatmul.mubr.f32.gmra.mxu0 %v237
        %v382 = vpop.f32.mrf.mxu0
        %v383 = vadd.f32 0.0, %v382
        %v384 = vpop.f32.mrf.mxu0
        %385 = vmatprep.mubr.f32.mxu0 0.0
        %386 = vmatmul.mubr.f32.gmra.mxu0 %v239
        %v387 = vpop.f32.mrf.mxu0
        %v388 = vadd.f32 0.0, %v387
        %v389 = vpop.f32.mrf.mxu0
        %390 = vmatprep.mubr.f32.mxu0 0.0
        %391 = vmatmul.mubr.f32.gmra.mxu0 %v241
        %v392 = vpop.f32.mrf.mxu0
        %v393 = vadd.f32 0.0, %v392
        %v394 = vpop.f32.mrf.mxu0
        %395 = vmatprep.mubr.f32.mxu0 0.0
        %396 = vmatmul.mubr.f32.gmra.mxu0 %v243
        %v397 = vpop.f32.mrf.mxu0
        %v398 = vadd.f32 0.0, %v397
        %v399 = vpop.f32.mrf.mxu0
        %400 = vmatprep.mubr.f32.mxu0 0.0
        %401 = vmatmul.mubr.f32.gmra.mxu0 %v245
        %v402 = vpop.f32.mrf.mxu0
        %v403 = vadd.f32 0.0, %v402
        %v404 = vpop.f32.mrf.mxu0
        %405 = vmatprep.mubr.f32.mxu0 0.0
        %406 = vmatmul.mubr.f32.gmra.mxu0 %v247
        %v407 = vpop.f32.mrf.mxu0
        %v408 = vadd.f32 0.0, %v407
        %v409 = vpop.f32.mrf.mxu0
        %410 = vmatprep.mubr.f32.mxu0 0.0
        %411 = vmatmul.mubr.f32.gmra.mxu0 %v249
        %v412 = vpop.f32.mrf.mxu0
        %v413 = vadd.f32 0.0, %v412
        %v414 = vpop.f32.mrf.mxu0
        %415 = vmatprep.mubr.f32.mxu0 0.0
        %416 = vmatmul.mubr.f32.gmra.mxu0 %v251
        %v417 = vpop.f32.mrf.mxu0
        %v418 = vadd.f32 0.0, %v417
        %v419 = vpop.f32.mrf.mxu0
        %420 = vmatprep.mubr.f32.mxu0 0.0
        %421 = vmatmul.mubr.f32.gmra.mxu0 %v253
        %v422 = vpop.f32.mrf.mxu0
        %v423 = vadd.f32 0.0, %v422
        %v424 = vpop.f32.mrf.mxu0
        %425 = vmatprep.mubr.f32.mxu0 0.0
        %426 = vmatmul.mubr.f32.gmra.mxu0 %v255
        %v427 = vpop.f32.mrf.mxu0
        %v428 = vadd.f32 0.0, %v427
        %v429 = vpop.f32.mrf.mxu0
        %430 = vmatprep.mubr.f32.mxu0 0.0
        %431 = vmatmul.mubr.f32.gmra.mxu0 %v257
        %v432 = vpop.f32.mrf.mxu0
        %v433 = vadd.f32 0.0, %v432
        %v434 = vpop.f32.mrf.mxu0
        %435 = vdwg.mxu0
        %v436 = vmul.f32 %v358, 0.35355338
        %v437 = vmul.f32 %v363, 0.35355338
        %v438 = vmul.f32 %v368, 0.35355338
        %v439 = vmul.f32 %v373, 0.35355338
        %v440 = vmul.f32 %v378, 0.35355338
        %v441 = vmul.f32 %v383, 0.35355338
        %v442 = vmul.f32 %v388, 0.35355338
        %v443 = vmul.f32 %v393, 0.35355338
        %v444 = vmul.f32 %v398, 0.35355338
        %v445 = vmul.f32 %v403, 0.35355338
        %v446 = vmul.f32 %v408, 0.35355338
        %v447 = vmul.f32 %v413, 0.35355338
        %v448 = vmul.f32 %v418, 0.35355338
        %v449 = vmul.f32 %v423, 0.35355338
        %v450 = vmul.f32 %v428, 0.35355338
        %v451 = vmul.f32 %v433, 0.35355338
        %v452 = vld [vmem:[#allocation2] sm:$0xff]
        %v453 = vld [vmem:[#allocation2 + $0x8] sm:$0xff]
        %v454 = vld [vmem:[#allocation2 + $0x10] sm:$0xff]
        %v455 = vld [vmem:[#allocation2 + $0x18] sm:$0xff]
        %v456 = vld [vmem:[#allocation2 + $0x20] sm:$0xff]
        %v457 = vld [vmem:[#allocation2 + $0x28] sm:$0xff]
        %v458 = vld [vmem:[#allocation2 + $0x30] sm:$0xff]
        %v459 = vld [vmem:[#allocation2 + $0x38] sm:$0xff]
        %v460 = vld [vmem:[#allocation2 + $0x40] sm:$0xff]
        %v461 = vld [vmem:[#allocation2 + $0x48] sm:$0xff]
        %v462 = vld [vmem:[#allocation2 + $0x50] sm:$0xff]
        %v463 = vld [vmem:[#allocation2 + $0x58] sm:$0xff]
        %v464 = vld [vmem:[#allocation2 + $0x60] sm:$0xff]
        %v465 = vld [vmem:[#allocation2 + $0x68] sm:$0xff]
        %v466 = vld [vmem:[#allocation2 + $0x70] sm:$0xff]
        %v467 = vld [vmem:[#allocation2 + $0x78] sm:$0xff]
        %v468 = vadd.f32 %v436, %v452
        %v469 = vadd.f32 %v437, %v453
        %v470 = vadd.f32 %v438, %v454
        %v471 = vadd.f32 %v439, %v455
        %v472 = vadd.f32 %v440, %v456
        %v473 = vadd.f32 %v441, %v457
        %v474 = vadd.f32 %v442, %v458
        %v475 = vadd.f32 %v443, %v459
        %v476 = vadd.f32 %v444, %v460
        %v477 = vadd.f32 %v445, %v461
        %v478 = vadd.f32 %v446, %v462
        %v479 = vadd.f32 %v447, %v463
        %v480 = vadd.f32 %v448, %v464
        %v481 = vadd.f32 %v449, %v465
        %v482 = vadd.f32 %v450, %v466
        %v483 = vadd.f32 %v451, %v467
        %484 = vmax.xlane.f32.xlu0 %v468
        %v485 = vpop.xlane.xlu0 %484
        %486 = vmax.xlane.f32.xlu0 %v469
        %v487 = vpop.xlane.xlu0 %486
        %488 = vmax.xlane.f32.xlu0 %v470
        %v489 = vpop.xlane.xlu0 %488
        %490 = vmax.xlane.f32.xlu0 %v471
        %v491 = vpop.xlane.xlu0 %490
        %492 = vmax.xlane.f32.xlu0 %v472
        %v493 = vpop.xlane.xlu0 %492
        %494 = vmax.xlane.f32.xlu0 %v473
        %v495 = vpop.xlane.xlu0 %494
        %496 = vmax.xlane.f32.xlu0 %v474
        %v497 = vpop.xlane.xlu0 %496
        %498 = vmax.xlane.f32.xlu0 %v475
        %v499 = vpop.xlane.xlu0 %498
        %500 = vmax.xlane.f32.xlu0 %v476
        %v501 = vpop.xlane.xlu0 %500
        %502 = vmax.xlane.f32.xlu0 %v477
        %v503 = vpop.xlane.xlu0 %502
        %504 = vmax.xlane.f32.xlu0 %v478
        %v505 = vpop.xlane.xlu0 %504
        %506 = vmax.xlane.f32.xlu0 %v479
        %v507 = vpop.xlane.xlu0 %506
        %508 = vmax.xlane.f32.xlu0 %v480
        %v509 = vpop.xlane.xlu0 %508
        %510 = vmax.xlane.f32.xlu0 %v481
        %v511 = vpop.xlane.xlu0 %510
        %512 = vmax.xlane.f32.xlu0 %v482
        %v513 = vpop.xlane.xlu0 %512
        %514 = vmax.xlane.f32.xlu0 %v483
        %v515 = vpop.xlane.xlu0 %514
        %v516 = vsub.f32 %v468, %v485
        %v517 = vsub.f32 %v469, %v487
        %v518 = vsub.f32 %v470, %v489
        %v519 = vsub.f32 %v471, %v491
        %v520 = vsub.f32 %v472, %v493
        %v521 = vsub.f32 %v473, %v495
        %v522 = vsub.f32 %v474, %v497
        %v523 = vsub.f32 %v475, %v499
        %v524 = vsub.f32 %v476, %v501
        %v525 = vsub.f32 %v477, %v503
        %v526 = vsub.f32 %v478, %v505
        %v527 = vsub.f32 %v479, %v507
        %v528 = vsub.f32 %v480, %v509
        %v529 = vsub.f32 %v481, %v511
        %v530 = vsub.f32 %v482, %v513
        %v531 = vsub.f32 %v483, %v515
        %v532 = vmul.f32 %v516, 1.442695
        %v533 = vpow.pop %v532
        %v534 = vmul.f32 %v517, 1.442695
        %v535 = vpow.pop %v534
        %v536 = vmul.f32 %v518, 1.442695
        %v537 = vpow.pop %v536
        %v538 = vmul.f32 %v519, 1.442695
        %v539 = vpow.pop %v538
        %v540 = vmul.f32 %v520, 1.442695
        %v541 = vpow.pop %v540
        %v542 = vmul.f32 %v521, 1.442695
        %v543 = vpow.pop %v542
        %v544 = vmul.f32 %v522, 1.442695
        %v545 = vpow.pop %v544
        %v546 = vmul.f32 %v523, 1.442695
        %v547 = vpow.pop %v546
        %v548 = vmul.f32 %v524, 1.442695
        %v549 = vpow.pop %v548
        %v550 = vmul.f32 %v525, 1.442695
        %v551 = vpow.pop %v550
        %v552 = vmul.f32 %v526, 1.442695
        %v553 = vpow.pop %v552
        %v554 = vmul.f32 %v527, 1.442695
        %v555 = vpow.pop %v554
        %v556 = vmul.f32 %v528, 1.442695
        %v557 = vpow.pop %v556
        %v558 = vmul.f32 %v529, 1.442695
        %v559 = vpow.pop %v558
        %v560 = vmul.f32 %v530, 1.442695
        %v561 = vpow.pop %v560
        %v562 = vmul.f32 %v531, 1.442695
        %v563 = vpow.pop %v562
        %564 = vadd.xlane.f32.xlu0 %v533
        %v565 = vpop.xlane.xlu0 %564
        %566 = vadd.xlane.f32.xlu0 %v535
        %v567 = vpop.xlane.xlu0 %566
        %568 = vadd.xlane.f32.xlu0 %v537
        %v569 = vpop.xlane.xlu0 %568
        %570 = vadd.xlane.f32.xlu0 %v539
        %v571 = vpop.xlane.xlu0 %570
        %572 = vadd.xlane.f32.xlu0 %v541
        %v573 = vpop.xlane.xlu0 %572
        %574 = vadd.xlane.f32.xlu0 %v543
        %v575 = vpop.xlane.xlu0 %574
        %576 = vadd.xlane.f32.xlu0 %v545
        %v577 = vpop.xlane.xlu0 %576
        %578 = vadd.xlane.f32.xlu0 %v547
        %v579 = vpop.xlane.xlu0 %578
        %580 = vadd.xlane.f32.xlu0 %v549
        %v581 = vpop.xlane.xlu0 %580
        %582 = vadd.xlane.f32.xlu0 %v551
        %v583 = vpop.xlane.xlu0 %582
        %584 = vadd.xlane.f32.xlu0 %v553
        %v585 = vpop.xlane.xlu0 %584
        %586 = vadd.xlane.f32.xlu0 %v555
        %v587 = vpop.xlane.xlu0 %586
        %588 = vadd.xlane.f32.xlu0 %v557
        %v589 = vpop.xlane.xlu0 %588
        %590 = vadd.xlane.f32.xlu0 %v559
        %v591 = vpop.xlane.xlu0 %590
        %592 = vadd.xlane.f32.xlu0 %v561
        %v593 = vpop.xlane.xlu0 %592
        %594 = vadd.xlane.f32.xlu0 %v563
        %v595 = vpop.xlane.xlu0 %594
        %v596 = vrcp.pop %v565
        %v597 = vrcp.pop %v567
        %v598 = vrcp.pop %v569
        %v599 = vrcp.pop %v571
        %v600 = vrcp.pop %v573
        %v601 = vrcp.pop %v575
        %v602 = vrcp.pop %v577
        %v603 = vrcp.pop %v579
        %v604 = vrcp.pop %v581
        %v605 = vrcp.pop %v583
        %v606 = vrcp.pop %v585
        %v607 = vrcp.pop %v587
        %v608 = vrcp.pop %v589
        %v609 = vrcp.pop %v591
        %v610 = vrcp.pop %v593
        %v611 = vrcp.pop %v595
        %v612 = vmul.f32 %v533, %v596
        %v613 = vmul.f32 %v535, %v597
        %v614 = vmul.f32 %v537, %v598
        %v615 = vmul.f32 %v539, %v599
        %v616 = vmul.f32 %v541, %v600
        %v617 = vmul.f32 %v543, %v601
        %v618 = vmul.f32 %v545, %v602
        %v619 = vmul.f32 %v547, %v603
        %v620 = vmul.f32 %v549, %v604
        %v621 = vmul.f32 %v551, %v605
        %v622 = vmul.f32 %v553, %v606
        %v623 = vmul.f32 %v555, %v607
        %v624 = vmul.f32 %v557, %v608
        %v625 = vmul.f32 %v559, %v609
        %v626 = vmul.f32 %v561, %v610
        %v627 = vmul.f32 %v563, %v611
        %628 = vrot.lane.b32.xlu0 %v162, 64
        %v629 = vpop.permute.xlu0 %628
        %630 = vrot.lane.b32.xlu0 %v163, 64
        %v631 = vpop.permute.xlu0 %630
        %632 = vrot.lane.b32.xlu0 %v164, 64
        %v633 = vpop.permute.xlu0 %632
        %634 = vrot.lane.b32.xlu0 %v165, 64
        %v635 = vpop.permute.xlu0 %634
        %636 = vrot.lane.b32.xlu0 %v166, 64
        %v637 = vpop.permute.xlu0 %636
        %638 = vrot.lane.b32.xlu0 %v167, 64
        %v639 = vpop.permute.xlu0 %638
        %640 = vrot.lane.b32.xlu0 %v168, 64
        %v641 = vpop.permute.xlu0 %640
        %642 = vrot.lane.b32.xlu0 %v169, 64
        %v643 = vpop.permute.xlu0 %642
        %644 = vrot.lane.b32.xlu0 %v170, 64
        %v645 = vpop.permute.xlu0 %644
        %646 = vrot.lane.b32.xlu0 %v171, 64
        %v647 = vpop.permute.xlu0 %646
        %648 = vrot.lane.b32.xlu0 %v172, 64
        %v649 = vpop.permute.xlu0 %648
        %650 = vrot.lane.b32.xlu0 %v173, 64
        %v651 = vpop.permute.xlu0 %650
        %652 = vrot.lane.b32.xlu0 %v174, 64
        %v653 = vpop.permute.xlu0 %652
        %654 = vrot.lane.b32.xlu0 %v175, 64
        %v655 = vpop.permute.xlu0 %654
        %656 = vrot.lane.b32.xlu0 %v176, 64
        %v657 = vpop.permute.xlu0 %656
        %658 = vrot.lane.b32.xlu0 %v177, 64
        %v659 = vpop.permute.xlu0 %658
        %676 = vmatprep.subr.mxu0 0.0
        %677 = vmatpush1.msra.mxu0 %v659
        %678 = vmatprep.subr.mxu0 0.0
        %679 = vmatpush1.msra.mxu0 %v657
        %680 = vmatprep.subr.mxu0 0.0
        %681 = vmatpush1.msra.mxu0 %v655
        %682 = vmatprep.subr.mxu0 0.0
        %683 = vmatpush1.msra.mxu0 %v653
        %684 = vmatprep.subr.mxu0 0.0
        %685 = vmatpush1.msra.mxu0 %v651
        %686 = vmatprep.subr.mxu0 0.0
        %687 = vmatpush1.msra.mxu0 %v649
        %688 = vmatprep.subr.mxu0 0.0
        %689 = vmatpush1.msra.mxu0 %v647
        %690 = vmatprep.subr.mxu0 0.0
        %691 = vmatpush1.msra.mxu0 %v645
        %692 = vmatprep.subr.mxu0 0.0
        %693 = vmatpush1.msra.mxu0 %v643
        %694 = vmatprep.subr.mxu0 0.0
        %695 = vmatpush1.msra.mxu0 %v641
        %696 = vmatprep.subr.mxu0 0.0
        %697 = vmatpush1.msra.mxu0 %v639
        %698 = vmatprep.subr.mxu0 0.0
        %699 = vmatpush1.msra.mxu0 %v637
        %700 = vmatprep.subr.mxu0 0.0
        %701 = vmatpush1.msra.mxu0 %v635
        %702 = vmatprep.subr.mxu0 0.0
        %703 = vmatpush1.msra.mxu0 %v633
        %704 = vmatprep.subr.mxu0 0.0
        %705 = vmatpush1.msra.mxu0 %v631
        %706 = vmatprep.subr.mxu0 0.0
        %707 = vmatpush1.msra.mxu0 %v629
        %708 = vmatprep.subr.mxu0 0.0
        %709 = vmatpush2.msra.mxu0 0.0
        %710 = vmatprep.subr.mxu0 0.0
        %711 = vmatpush2.msra.mxu0 0.0
        %712 = vmatprep.subr.mxu0 0.0
        %713 = vmatpush2.msra.mxu0 0.0
        %714 = vmatprep.subr.mxu0 0.0
        %715 = vmatpush2.msra.mxu0 0.0
        %716 = vmatprep.subr.mxu0 0.0
        %717 = vmatpush2.msra.mxu0 0.0
        %718 = vmatprep.subr.mxu0 0.0
        %719 = vmatpush2.msra.mxu0 0.0
        %720 = vmatprep.subr.mxu0 0.0
        %721 = vmatpush2.msra.mxu0 0.0
        %722 = vmatprep.subr.mxu0 0.0
        %723 = vmatpush2.msra.mxu0 0.0
        %724 = vmatprep.subr.mxu0 0.0
        %725 = vmatpush2.msra.mxu0 0.0
        %726 = vmatprep.subr.mxu0 0.0
        %727 = vmatpush2.msra.mxu0 0.0
        %728 = vmatprep.subr.mxu0 0.0
        %729 = vmatpush2.msra.mxu0 0.0
        %730 = vmatprep.subr.mxu0 0.0
        %731 = vmatpush2.msra.mxu0 0.0
        %732 = vmatprep.subr.mxu0 0.0
        %733 = vmatpush2.msra.mxu0 0.0
        %734 = vmatprep.subr.mxu0 0.0
        %735 = vmatpush2.msra.mxu0 0.0
        %736 = vmatprep.subr.mxu0 0.0
        %737 = vmatpush2.msra.mxu0 0.0
        %738 = vmatprep.subr.mxu0 0.0
        %739 = vmatpush2.msra.mxu0 0.0
        %740 = vmatprep.mubr.f32.mxu0 0.0
        %741 = vmatmul.mubr.f32.gmra.mxu0 %v612
        %v742 = vpop.f32.mrf.mxu0
        %v743 = vadd.f32 0.0, %v742
        %v744 = vpop.f32.mrf.mxu0
        %745 = vmatprep.mubr.f32.mxu0 0.0
        %746 = vmatmul.mubr.f32.gmra.mxu0 %v613
        %v747 = vpop.f32.mrf.mxu0
        %v748 = vadd.f32 0.0, %v747
        %v749 = vpop.f32.mrf.mxu0
        %750 = vmatprep.mubr.f32.mxu0 0.0
        %751 = vmatmul.mubr.f32.gmra.mxu0 %v614
        %v752 = vpop.f32.mrf.mxu0
        %v753 = vadd.f32 0.0, %v752
        %v754 = vpop.f32.mrf.mxu0
        %755 = vmatprep.mubr.f32.mxu0 0.0
        %756 = vmatmul.mubr.f32.gmra.mxu0 %v615
        %v757 = vpop.f32.mrf.mxu0
        %v758 = vadd.f32 0.0, %v757
        %v759 = vpop.f32.mrf.mxu0
        %760 = vmatprep.mubr.f32.mxu0 0.0
        %761 = vmatmul.mubr.f32.gmra.mxu0 %v616
        %v762 = vpop.f32.mrf.mxu0
        %v763 = vadd.f32 0.0, %v762
        %v764 = vpop.f32.mrf.mxu0
        %765 = vmatprep.mubr.f32.mxu0 0.0
        %766 = vmatmul.mubr.f32.gmra.mxu0 %v617
        %v767 = vpop.f32.mrf.mxu0
        %v768 = vadd.f32 0.0, %v767
        %v769 = vpop.f32.mrf.mxu0
        %770 = vmatprep.mubr.f32.mxu0 0.0
        %771 = vmatmul.mubr.f32.gmra.mxu0 %v618
        %v772 = vpop.f32.mrf.mxu0
        %v773 = vadd.f32 0.0, %v772
        %v774 = vpop.f32.mrf.mxu0
        %775 = vmatprep.mubr.f32.mxu0 0.0
        %776 = vmatmul.mubr.f32.gmra.mxu0 %v619
        %v777 = vpop.f32.mrf.mxu0
        %v778 = vadd.f32 0.0, %v777
        %v779 = vpop.f32.mrf.mxu0
        %780 = vmatprep.mubr.f32.mxu0 0.0
        %781 = vmatmul.mubr.f32.gmra.mxu0 %v620
        %v782 = vpop.f32.mrf.mxu0
        %v783 = vadd.f32 0.0, %v782
        %v784 = vpop.f32.mrf.mxu0
        %785 = vmatprep.mubr.f32.mxu0 0.0
        %786 = vmatmul.mubr.f32.gmra.mxu0 %v621
        %v787 = vpop.f32.mrf.mxu0
        %v788 = vadd.f32 0.0, %v787
        %v789 = vpop.f32.mrf.mxu0
        %790 = vmatprep.mubr.f32.mxu0 0.0
        %791 = vmatmul.mubr.f32.gmra.mxu0 %v622
        %v792 = vpop.f32.mrf.mxu0
        %v793 = vadd.f32 0.0, %v792
        %v794 = vpop.f32.mrf.mxu0
        %795 = vmatprep.mubr.f32.mxu0 0.0
        %796 = vmatmul.mubr.f32.gmra.mxu0 %v623
        %v797 = vpop.f32.mrf.mxu0
        %v798 = vadd.f32 0.0, %v797
        %v799 = vpop.f32.mrf.mxu0
        %800 = vmatprep.mubr.f32.mxu0 0.0
        %801 = vmatmul.mubr.f32.gmra.mxu0 %v624
        %v802 = vpop.f32.mrf.mxu0
        %v803 = vadd.f32 0.0, %v802
        %v804 = vpop.f32.mrf.mxu0
        %805 = vmatprep.mubr.f32.mxu0 0.0
        %806 = vmatmul.mubr.f32.gmra.mxu0 %v625
        %v807 = vpop.f32.mrf.mxu0
        %v808 = vadd.f32 0.0, %v807
        %v809 = vpop.f32.mrf.mxu0
        %810 = vmatprep.mubr.f32.mxu0 0.0
        %811 = vmatmul.mubr.f32.gmra.mxu0 %v626
        %v812 = vpop.f32.mrf.mxu0
        %v813 = vadd.f32 0.0, %v812
        %v814 = vpop.f32.mrf.mxu0
        %815 = vmatprep.mubr.f32.mxu0 0.0
        %816 = vmatmul.mubr.f32.gmra.mxu0 %v627
        %v817 = vpop.f32.mrf.mxu0
        %v818 = vadd.f32 0.0, %v817
        %v819 = vpop.f32.mrf.mxu0
        %820 = vdwg.mxu0
        %821 = vst.msk [vmem:[%s160] sm:$0xff] %vm226, %v743
        %822 = vst.msk [vmem:[%s160 + $0x8] sm:$0xff] %vm226, %v748
        %823 = vst.msk [vmem:[%s160 + $0x10] sm:$0xff] %vm226, %v753
        %824 = vst.msk [vmem:[%s160 + $0x18] sm:$0xff] %vm226, %v758
        %825 = vst.msk [vmem:[%s160 + $0x20] sm:$0xff] %vm226, %v763
        %826 = vst.msk [vmem:[%s160 + $0x28] sm:$0xff] %vm226, %v768
        %827 = vst.msk [vmem:[%s160 + $0x30] sm:$0xff] %vm226, %v773
        %828 = vst.msk [vmem:[%s160 + $0x38] sm:$0xff] %vm226, %v778
        %829 = vst.msk [vmem:[%s160 + $0x40] sm:$0xff] %vm226, %v783
        %830 = vst.msk [vmem:[%s160 + $0x48] sm:$0xff] %vm226, %v788
        %831 = vst.msk [vmem:[%s160 + $0x50] sm:$0xff] %vm226, %v793
        %832 = vst.msk [vmem:[%s160 + $0x58] sm:$0xff] %vm226, %v798
        %833 = vst.msk [vmem:[%s160 + $0x60] sm:$0xff] %vm226, %v803
        %834 = vst.msk [vmem:[%s160 + $0x68] sm:$0xff] %vm226, %v808
        %835 = vst.msk [vmem:[%s160 + $0x70] sm:$0xff] %vm226, %v813
        %836 = vst.msk [vmem:[%s160 + $0x78] sm:$0xff] %vm226, %v818
        %v837 = vld [vmem:[%s154] sm:$0xff]
        %v838 = vld [vmem:[%s154 + $0x8] sm:$0xff]
        %v839 = vld [vmem:[%s154 + $0x10] sm:$0xff]
        %v840 = vld [vmem:[%s154 + $0x18] sm:$0xff]
        %v841 = vld [vmem:[%s154 + $0x20] sm:$0xff]
        %v842 = vld [vmem:[%s154 + $0x28] sm:$0xff]
        %v843 = vld [vmem:[%s154 + $0x30] sm:$0xff]
        %v844 = vld [vmem:[%s154 + $0x38] sm:$0xff]
        %v845 = vld [vmem:[%s154 + $0x40] sm:$0xff]
        %v846 = vld [vmem:[%s154 + $0x48] sm:$0xff]
        %v847 = vld [vmem:[%s154 + $0x50] sm:$0xff]
        %v848 = vld [vmem:[%s154 + $0x58] sm:$0xff]
        %v849 = vld [vmem:[%s154 + $0x60] sm:$0xff]
        %v850 = vld [vmem:[%s154 + $0x68] sm:$0xff]
        %v851 = vld [vmem:[%s154 + $0x70] sm:$0xff]
        %v852 = vld [vmem:[%s154 + $0x78] sm:$0xff]
        %869 = vrot.lane.b32.xlu0 %v837, 120
        %v870 = vpop.permute.xlu0 %869
        %871 = vrot.lane.b32.xlu0 %v838, 120
        %v872 = vpop.permute.xlu0 %871
        %873 = vrot.lane.b32.xlu0 %v839, 120
        %v874 = vpop.permute.xlu0 %873
        %875 = vrot.lane.b32.xlu0 %v840, 120
        %v876 = vpop.permute.xlu0 %875
        %877 = vrot.lane.b32.xlu0 %v841, 120
        %v878 = vpop.permute.xlu0 %877
        %879 = vrot.lane.b32.xlu0 %v842, 120
        %v880 = vpop.permute.xlu0 %879
        %881 = vrot.lane.b32.xlu0 %v843, 120
        %v882 = vpop.permute.xlu0 %881
        %883 = vrot.lane.b32.xlu0 %v844, 120
        %v884 = vpop.permute.xlu0 %883
        %885 = vrot.lane.b32.xlu0 %v845, 120
        %v886 = vpop.permute.xlu0 %885
        %887 = vrot.lane.b32.xlu0 %v846, 120
        %v888 = vpop.permute.xlu0 %887
        %889 = vrot.lane.b32.xlu0 %v847, 120
        %v890 = vpop.permute.xlu0 %889
        %891 = vrot.lane.b32.xlu0 %v848, 120
        %v892 = vpop.permute.xlu0 %891
        %893 = vrot.lane.b32.xlu0 %v849, 120
        %v894 = vpop.permute.xlu0 %893
        %895 = vrot.lane.b32.xlu0 %v850, 120
        %v896 = vpop.permute.xlu0 %895
        %897 = vrot.lane.b32.xlu0 %v851, 120
        %v898 = vpop.permute.xlu0 %897
        %899 = vrot.lane.b32.xlu0 %v852, 120
        %v900 = vpop.permute.xlu0 %899
        %901 = vrot.lane.b32.xlu0 %v837, 88
        %v902 = vpop.permute.xlu0 %901
        %903 = vrot.lane.b32.xlu0 %v838, 88
        %v904 = vpop.permute.xlu0 %903
        %905 = vrot.lane.b32.xlu0 %v839, 88
        %v906 = vpop.permute.xlu0 %905
        %907 = vrot.lane.b32.xlu0 %v840, 88
        %v908 = vpop.permute.xlu0 %907
        %909 = vrot.lane.b32.xlu0 %v841, 88
        %v910 = vpop.permute.xlu0 %909
        %911 = vrot.lane.b32.xlu0 %v842, 88
        %v912 = vpop.permute.xlu0 %911
        %913 = vrot.lane.b32.xlu0 %v843, 88
        %v914 = vpop.permute.xlu0 %913
        %915 = vrot.lane.b32.xlu0 %v844, 88
        %v916 = vpop.permute.xlu0 %915
        %917 = vrot.lane.b32.xlu0 %v845, 88
        %v918 = vpop.permute.xlu0 %917
        %919 = vrot.lane.b32.xlu0 %v846, 88
        %v920 = vpop.permute.xlu0 %919
        %921 = vrot.lane.b32.xlu0 %v847, 88
        %v922 = vpop.permute.xlu0 %921
        %923 = vrot.lane.b32.xlu0 %v848, 88
        %v924 = vpop.permute.xlu0 %923
        %925 = vrot.lane.b32.xlu0 %v849, 88
        %v926 = vpop.permute.xlu0 %925
        %927 = vrot.lane.b32.xlu0 %v850, 88
        %v928 = vpop.permute.xlu0 %927
        %929 = vrot.lane.b32.xlu0 %v851, 88
        %v930 = vpop.permute.xlu0 %929
        %931 = vrot.lane.b32.xlu0 %v852, 88
        %v932 = vpop.permute.xlu0 %931
        %v933 = vsel %vm226, %v870, 0
        %v935 = vsel %vm226, %v872, 0
        %v937 = vsel %vm226, %v874, 0
        %v939 = vsel %vm226, %v876, 0
        %v941 = vsel %vm226, %v878, 0
        %v943 = vsel %vm226, %v880, 0
        %v945 = vsel %vm226, %v882, 0
        %v947 = vsel %vm226, %v884, 0
        %v949 = vsel %vm226, %v886, 0
        %v951 = vsel %vm226, %v888, 0
        %v953 = vsel %vm226, %v890, 0
        %v955 = vsel %vm226, %v892, 0
        %v957 = vsel %vm226, %v894, 0
        %v959 = vsel %vm226, %v896, 0
        %v961 = vsel %vm226, %v898, 0
        %v963 = vsel %vm226, %v900, 0
        %v965 = vsel %vm226, %v902, 0
        %v967 = vsel %vm226, %v904, 0
        %v969 = vsel %vm226, %v906, 0
        %v971 = vsel %vm226, %v908, 0
        %v973 = vsel %vm226, %v910, 0
        %v975 = vsel %vm226, %v912, 0
        %v977 = vsel %vm226, %v914, 0
        %v979 = vsel %vm226, %v916, 0
        %v981 = vsel %vm226, %v918, 0
        %v983 = vsel %vm226, %v920, 0
        %v985 = vsel %vm226, %v922, 0
        %v987 = vsel %vm226, %v924, 0
        %v989 = vsel %vm226, %v926, 0
        %v991 = vsel %vm226, %v928, 0
        %v993 = vsel %vm226, %v930, 0
        %v995 = vsel %vm226, %v932, 0
        %997 = vmatprep.subr.mxu0 0.0
        %998 = vmatpush1.xpose.msra.mxu0 %v995
        %999 = vmatprep.subr.mxu0 0.0
        %1000 = vmatpush1.xpose.msra.mxu0 %v993
        %1001 = vmatprep.subr.mxu0 0.0
        %1002 = vmatpush1.xpose.msra.mxu0 %v991
        %1003 = vmatprep.subr.mxu0 0.0
        %1004 = vmatpush1.xpose.msra.mxu0 %v989
        %1005 = vmatprep.subr.mxu0 0.0
        %1006 = vmatpush1.xpose.msra.mxu0 %v987
        %1007 = vmatprep.subr.mxu0 0.0
        %1008 = vmatpush1.xpose.msra.mxu0 %v985
        %1009 = vmatprep.subr.mxu0 0.0
        %1010 = vmatpush1.xpose.msra.mxu0 %v983
        %1011 = vmatprep.subr.mxu0 0.0
        %1012 = vmatpush1.xpose.msra.mxu0 %v981
        %1013 = vmatprep.subr.mxu0 0.0
        %1014 = vmatpush1.xpose.msra.mxu0 %v979
        %1015 = vmatprep.subr.mxu0 0.0
        %1016 = vmatpush1.xpose.msra.mxu0 %v977
        %1017 = vmatprep.subr.mxu0 0.0
        %1018 = vmatpush1.xpose.msra.mxu0 %v975
        %1019 = vmatprep.subr.mxu0 0.0
        %1020 = vmatpush1.xpose.msra.mxu0 %v973
        %1021 = vmatprep.subr.mxu0 0.0
        %1022 = vmatpush1.xpose.msra.mxu0 %v971
        %1023 = vmatprep.subr.mxu0 0.0
        %1024 = vmatpush1.xpose.msra.mxu0 %v969
        %1025 = vmatprep.subr.mxu0 0.0
        %1026 = vmatpush1.xpose.msra.mxu0 %v967
        %1027 = vmatprep.subr.mxu0 0.0
        %1028 = vmatpush1.xpose.msra.mxu0 %v965
        %1029 = vmatprep.subr.mxu0 0.0
        %1030 = vmatpush2.xpose.msra.mxu0 0.0
        %1031 = vmatprep.subr.mxu0 0.0
        %1032 = vmatpush2.xpose.msra.mxu0 0.0
        %1033 = vmatprep.subr.mxu0 0.0
        %1034 = vmatpush2.xpose.msra.mxu0 0.0
        %1035 = vmatprep.subr.mxu0 0.0
        %1036 = vmatpush2.xpose.msra.mxu0 0.0
        %1037 = vmatprep.subr.mxu0 0.0
        %1038 = vmatpush2.xpose.msra.mxu0 0.0
        %1039 = vmatprep.subr.mxu0 0.0
        %1040 = vmatpush2.xpose.msra.mxu0 0.0
        %1041 = vmatprep.subr.mxu0 0.0
        %1042 = vmatpush2.xpose.msra.mxu0 0.0
        %1043 = vmatprep.subr.mxu0 0.0
        %1044 = vmatpush2.xpose.msra.mxu0 0.0
        %1045 = vmatprep.subr.mxu0 0.0
        %1046 = vmatpush2.xpose.msra.mxu0 0.0
        %1047 = vmatprep.subr.mxu0 0.0
        %1048 = vmatpush2.xpose.msra.mxu0 0.0
        %1049 = vmatprep.subr.mxu0 0.0
        %1050 = vmatpush2.xpose.msra.mxu0 0.0
        %1051 = vmatprep.subr.mxu0 0.0
        %1052 = vmatpush2.xpose.msra.mxu0 0.0
        %1053 = vmatprep.subr.mxu0 0.0
        %1054 = vmatpush2.xpose.msra.mxu0 0.0
        %1055 = vmatprep.subr.mxu0 0.0
        %1056 = vmatpush2.xpose.msra.mxu0 0.0
        %1057 = vmatprep.subr.mxu0 0.0
        %1058 = vmatpush2.xpose.msra.mxu0 0.0
        %1059 = vmatprep.subr.mxu0 0.0
        %1060 = vmatpush2.xpose.msra.mxu0 0.0
        %1061 = vmatprep.mubr.f32.mxu0 0.0
        %1062 = vmatmul.mubr.f32.gmra.mxu0 %v933
        %v1063 = vpop.f32.mrf.mxu0
        %v1064 = vadd.f32 0.0, %v1063
        %v1065 = vpop.f32.mrf.mxu0
        %1066 = vmatprep.mubr.f32.mxu0 0.0
        %1067 = vmatmul.mubr.f32.gmra.mxu0 %v935
        %v1068 = vpop.f32.mrf.mxu0
        %v1069 = vadd.f32 0.0, %v1068
        %v1070 = vpop.f32.mrf.mxu0
        %1071 = vmatprep.mubr.f32.mxu0 0.0
        %1072 = vmatmul.mubr.f32.gmra.mxu0 %v937
        %v1073 = vpop.f32.mrf.mxu0
        %v1074 = vadd.f32 0.0, %v1073
        %v1075 = vpop.f32.mrf.mxu0
        %1076 = vmatprep.mubr.f32.mxu0 0.0
        %1077 = vmatmul.mubr.f32.gmra.mxu0 %v939
        %v1078 = vpop.f32.mrf.mxu0
        %v1079 = vadd.f32 0.0, %v1078
        %v1080 = vpop.f32.mrf.mxu0
        %1081 = vmatprep.mubr.f32.mxu0 0.0
        %1082 = vmatmul.mubr.f32.gmra.mxu0 %v941
        %v1083 = vpop.f32.mrf.mxu0
        %v1084 = vadd.f32 0.0, %v1083
        %v1085 = vpop.f32.mrf.mxu0
        %1086 = vmatprep.mubr.f32.mxu0 0.0
        %1087 = vmatmul.mubr.f32.gmra.mxu0 %v943
        %v1088 = vpop.f32.mrf.mxu0
        %v1089 = vadd.f32 0.0, %v1088
        %v1090 = vpop.f32.mrf.mxu0
        %1091 = vmatprep.mubr.f32.mxu0 0.0
        %1092 = vmatmul.mubr.f32.gmra.mxu0 %v945
        %v1093 = vpop.f32.mrf.mxu0
        %v1094 = vadd.f32 0.0, %v1093
        %v1095 = vpop.f32.mrf.mxu0
        %1096 = vmatprep.mubr.f32.mxu0 0.0
        %1097 = vmatmul.mubr.f32.gmra.mxu0 %v947
        %v1098 = vpop.f32.mrf.mxu0
        %v1099 = vadd.f32 0.0, %v1098
        %v1100 = vpop.f32.mrf.mxu0
        %1101 = vmatprep.mubr.f32.mxu0 0.0
        %1102 = vmatmul.mubr.f32.gmra.mxu0 %v949
        %v1103 = vpop.f32.mrf.mxu0
        %v1104 = vadd.f32 0.0, %v1103
        %v1105 = vpop.f32.mrf.mxu0
        %1106 = vmatprep.mubr.f32.mxu0 0.0
        %1107 = vmatmul.mubr.f32.gmra.mxu0 %v951
        %v1108 = vpop.f32.mrf.mxu0
        %v1109 = vadd.f32 0.0, %v1108
        %v1110 = vpop.f32.mrf.mxu0
        %1111 = vmatprep.mubr.f32.mxu0 0.0
        %1112 = vmatmul.mubr.f32.gmra.mxu0 %v953
        %v1113 = vpop.f32.mrf.mxu0
        %v1114 = vadd.f32 0.0, %v1113
        %v1115 = vpop.f32.mrf.mxu0
        %1116 = vmatprep.mubr.f32.mxu0 0.0
        %1117 = vmatmul.mubr.f32.gmra.mxu0 %v955
        %v1118 = vpop.f32.mrf.mxu0
        %v1119 = vadd.f32 0.0, %v1118
        %v1120 = vpop.f32.mrf.mxu0
        %1121 = vmatprep.mubr.f32.mxu0 0.0
        %1122 = vmatmul.mubr.f32.gmra.mxu0 %v957
        %v1123 = vpop.f32.mrf.mxu0
        %v1124 = vadd.f32 0.0, %v1123
        %v1125 = vpop.f32.mrf.mxu0
        %1126 = vmatprep.mubr.f32.mxu0 0.0
        %1127 = vmatmul.mubr.f32.gmra.mxu0 %v959
        %v1128 = vpop.f32.mrf.mxu0
        %v1129 = vadd.f32 0.0, %v1128
        %v1130 = vpop.f32.mrf.mxu0
        %1131 = vmatprep.mubr.f32.mxu0 0.0
        %1132 = vmatmul.mubr.f32.gmra.mxu0 %v961
        %v1133 = vpop.f32.mrf.mxu0
        %v1134 = vadd.f32 0.0, %v1133
        %v1135 = vpop.f32.mrf.mxu0
        %1136 = vmatprep.mubr.f32.mxu0 0.0
        %1137 = vmatmul.mubr.f32.gmra.mxu0 %v963
        %v1138 = vpop.f32.mrf.mxu0
        %v1139 = vadd.f32 0.0, %v1138
        %v1140 = vpop.f32.mrf.mxu0
        %1141 = vdwg.mxu0
        %v1142 = vmul.f32 %v1064, 0.35355338
        %v1143 = vmul.f32 %v1069, 0.35355338
        %v1144 = vmul.f32 %v1074, 0.35355338
        %v1145 = vmul.f32 %v1079, 0.35355338
        %v1146 = vmul.f32 %v1084, 0.35355338
        %v1147 = vmul.f32 %v1089, 0.35355338
        %v1148 = vmul.f32 %v1094, 0.35355338
        %v1149 = vmul.f32 %v1099, 0.35355338
        %v1150 = vmul.f32 %v1104, 0.35355338
        %v1151 = vmul.f32 %v1109, 0.35355338
        %v1152 = vmul.f32 %v1114, 0.35355338
        %v1153 = vmul.f32 %v1119, 0.35355338
        %v1154 = vmul.f32 %v1124, 0.35355338
        %v1155 = vmul.f32 %v1129, 0.35355338
        %v1156 = vmul.f32 %v1134, 0.35355338
        %v1157 = vmul.f32 %v1139, 0.35355338
        %s1158 = scalar_lea.vmem [#allocation2], 128
        %v1159 = vld [vmem:[%s1158] sm:$0xff]
        %v1160 = vld [vmem:[%s1158 + $0x8] sm:$0xff]
        %v1161 = vld [vmem:[%s1158 + $0x10] sm:$0xff]
        %v1162 = vld [vmem:[%s1158 + $0x18] sm:$0xff]
        %v1163 = vld [vmem:[%s1158 + $0x20] sm:$0xff]
        %v1164 = vld [vmem:[%s1158 + $0x28] sm:$0xff]
        %v1165 = vld [vmem:[%s1158 + $0x30] sm:$0xff]
        %v1166 = vld [vmem:[%s1158 + $0x38] sm:$0xff]
        %v1167 = vld [vmem:[%s1158 + $0x40] sm:$0xff]
        %v1168 = vld [vmem:[%s1158 + $0x48] sm:$0xff]
        %v1169 = vld [vmem:[%s1158 + $0x50] sm:$0xff]
        %v1170 = vld [vmem:[%s1158 + $0x58] sm:$0xff]
        %v1171 = vld [vmem:[%s1158 + $0x60] sm:$0xff]
        %v1172 = vld [vmem:[%s1158 + $0x68] sm:$0xff]
        %v1173 = vld [vmem:[%s1158 + $0x70] sm:$0xff]
        %v1174 = vld [vmem:[%s1158 + $0x78] sm:$0xff]
        %v1175 = vadd.f32 %v1142, %v1159
        %v1176 = vadd.f32 %v1143, %v1160
        %v1177 = vadd.f32 %v1144, %v1161
        %v1178 = vadd.f32 %v1145, %v1162
        %v1179 = vadd.f32 %v1146, %v1163
        %v1180 = vadd.f32 %v1147, %v1164
        %v1181 = vadd.f32 %v1148, %v1165
        %v1182 = vadd.f32 %v1149, %v1166
        %v1183 = vadd.f32 %v1150, %v1167
        %v1184 = vadd.f32 %v1151, %v1168
        %v1185 = vadd.f32 %v1152, %v1169
        %v1186 = vadd.f32 %v1153, %v1170
        %v1187 = vadd.f32 %v1154, %v1171
        %v1188 = vadd.f32 %v1155, %v1172
        %v1189 = vadd.f32 %v1156, %v1173
        %v1190 = vadd.f32 %v1157, %v1174
        %1191 = vmax.xlane.f32.xlu0 %v1175
        %v1192 = vpop.xlane.xlu0 %1191
        %1193 = vmax.xlane.f32.xlu0 %v1176
        %v1194 = vpop.xlane.xlu0 %1193
        %1195 = vmax.xlane.f32.xlu0 %v1177
        %v1196 = vpop.xlane.xlu0 %1195
        %1197 = vmax.xlane.f32.xlu0 %v1178
        %v1198 = vpop.xlane.xlu0 %1197
        %1199 = vmax.xlane.f32.xlu0 %v1179
        %v1200 = vpop.xlane.xlu0 %1199
        %1201 = vmax.xlane.f32.xlu0 %v1180
        %v1202 = vpop.xlane.xlu0 %1201
        %1203 = vmax.xlane.f32.xlu0 %v1181
        %v1204 = vpop.xlane.xlu0 %1203
        %1205 = vmax.xlane.f32.xlu0 %v1182
        %v1206 = vpop.xlane.xlu0 %1205
        %1207 = vmax.xlane.f32.xlu0 %v1183
        %v1208 = vpop.xlane.xlu0 %1207
        %1209 = vmax.xlane.f32.xlu0 %v1184
        %v1210 = vpop.xlane.xlu0 %1209
        %1211 = vmax.xlane.f32.xlu0 %v1185
        %v1212 = vpop.xlane.xlu0 %1211
        %1213 = vmax.xlane.f32.xlu0 %v1186
        %v1214 = vpop.xlane.xlu0 %1213
        %1215 = vmax.xlane.f32.xlu0 %v1187
        %v1216 = vpop.xlane.xlu0 %1215
        %1217 = vmax.xlane.f32.xlu0 %v1188
        %v1218 = vpop.xlane.xlu0 %1217
        %1219 = vmax.xlane.f32.xlu0 %v1189
        %v1220 = vpop.xlane.xlu0 %1219
        %1221 = vmax.xlane.f32.xlu0 %v1190
        %v1222 = vpop.xlane.xlu0 %1221
        %v1223 = vsub.f32 %v1175, %v1192
        %v1224 = vsub.f32 %v1176, %v1194
        %v1225 = vsub.f32 %v1177, %v1196
        %v1226 = vsub.f32 %v1178, %v1198
        %v1227 = vsub.f32 %v1179, %v1200
        %v1228 = vsub.f32 %v1180, %v1202
        %v1229 = vsub.f32 %v1181, %v1204
        %v1230 = vsub.f32 %v1182, %v1206
        %v1231 = vsub.f32 %v1183, %v1208
        %v1232 = vsub.f32 %v1184, %v1210
        %v1233 = vsub.f32 %v1185, %v1212
        %v1234 = vsub.f32 %v1186, %v1214
        %v1235 = vsub.f32 %v1187, %v1216
        %v1236 = vsub.f32 %v1188, %v1218
        %v1237 = vsub.f32 %v1189, %v1220
        %v1238 = vsub.f32 %v1190, %v1222
        %v1239 = vmul.f32 %v1223, 1.442695
        %v1240 = vpow.pop %v1239
        %v1241 = vmul.f32 %v1224, 1.442695
        %v1242 = vpow.pop %v1241
        %v1243 = vmul.f32 %v1225, 1.442695
        %v1244 = vpow.pop %v1243
        %v1245 = vmul.f32 %v1226, 1.442695
        %v1246 = vpow.pop %v1245
        %v1247 = vmul.f32 %v1227, 1.442695
        %v1248 = vpow.pop %v1247
        %v1249 = vmul.f32 %v1228, 1.442695
        %v1250 = vpow.pop %v1249
        %v1251 = vmul.f32 %v1229, 1.442695
        %v1252 = vpow.pop %v1251
        %v1253 = vmul.f32 %v1230, 1.442695
        %v1254 = vpow.pop %v1253
        %v1255 = vmul.f32 %v1231, 1.442695
        %v1256 = vpow.pop %v1255
        %v1257 = vmul.f32 %v1232, 1.442695
        %v1258 = vpow.pop %v1257
        %v1259 = vmul.f32 %v1233, 1.442695
        %v1260 = vpow.pop %v1259
        %v1261 = vmul.f32 %v1234, 1.442695
        %v1262 = vpow.pop %v1261
        %v1263 = vmul.f32 %v1235, 1.442695
        %v1264 = vpow.pop %v1263
        %v1265 = vmul.f32 %v1236, 1.442695
        %v1266 = vpow.pop %v1265
        %v1267 = vmul.f32 %v1237, 1.442695
        %v1268 = vpow.pop %v1267
        %v1269 = vmul.f32 %v1238, 1.442695
        %v1270 = vpow.pop %v1269
        %1271 = vadd.xlane.f32.xlu0 %v1240
        %v1272 = vpop.xlane.xlu0 %1271
        %1273 = vadd.xlane.f32.xlu0 %v1242
        %v1274 = vpop.xlane.xlu0 %1273
        %1275 = vadd.xlane.f32.xlu0 %v1244
        %v1276 = vpop.xlane.xlu0 %1275
        %1277 = vadd.xlane.f32.xlu0 %v1246
        %v1278 = vpop.xlane.xlu0 %1277
        %1279 = vadd.xlane.f32.xlu0 %v1248
        %v1280 = vpop.xlane.xlu0 %1279
        %1281 = vadd.xlane.f32.xlu0 %v1250
        %v1282 = vpop.xlane.xlu0 %1281
        %1283 = vadd.xlane.f32.xlu0 %v1252
        %v1284 = vpop.xlane.xlu0 %1283
        %1285 = vadd.xlane.f32.xlu0 %v1254
        %v1286 = vpop.xlane.xlu0 %1285
        %1287 = vadd.xlane.f32.xlu0 %v1256
        %v1288 = vpop.xlane.xlu0 %1287
        %1289 = vadd.xlane.f32.xlu0 %v1258
        %v1290 = vpop.xlane.xlu0 %1289
        %1291 = vadd.xlane.f32.xlu0 %v1260
        %v1292 = vpop.xlane.xlu0 %1291
        %1293 = vadd.xlane.f32.xlu0 %v1262
        %v1294 = vpop.xlane.xlu0 %1293
        %1295 = vadd.xlane.f32.xlu0 %v1264
        %v1296 = vpop.xlane.xlu0 %1295
        %1297 = vadd.xlane.f32.xlu0 %v1266
        %v1298 = vpop.xlane.xlu0 %1297
        %1299 = vadd.xlane.f32.xlu0 %v1268
        %v1300 = vpop.xlane.xlu0 %1299
        %1301 = vadd.xlane.f32.xlu0 %v1270
        %v1302 = vpop.xlane.xlu0 %1301
        %v1303 = vrcp.pop %v1272
        %v1304 = vrcp.pop %v1274
        %v1305 = vrcp.pop %v1276
        %v1306 = vrcp.pop %v1278
        %v1307 = vrcp.pop %v1280
        %v1308 = vrcp.pop %v1282
        %v1309 = vrcp.pop %v1284
        %v1310 = vrcp.pop %v1286
        %v1311 = vrcp.pop %v1288
        %v1312 = vrcp.pop %v1290
        %v1313 = vrcp.pop %v1292
        %v1314 = vrcp.pop %v1294
        %v1315 = vrcp.pop %v1296
        %v1316 = vrcp.pop %v1298
        %v1317 = vrcp.pop %v1300
        %v1318 = vrcp.pop %v1302
        %v1319 = vmul.f32 %v1240, %v1303
        %v1320 = vmul.f32 %v1242, %v1304
        %v1321 = vmul.f32 %v1244, %v1305
        %v1322 = vmul.f32 %v1246, %v1306
        %v1323 = vmul.f32 %v1248, %v1307
        %v1324 = vmul.f32 %v1250, %v1308
        %v1325 = vmul.f32 %v1252, %v1309
        %v1326 = vmul.f32 %v1254, %v1310
        %v1327 = vmul.f32 %v1256, %v1311
        %v1328 = vmul.f32 %v1258, %v1312
        %v1329 = vmul.f32 %v1260, %v1313
        %v1330 = vmul.f32 %v1262, %v1314
        %v1331 = vmul.f32 %v1264, %v1315
        %v1332 = vmul.f32 %v1266, %v1316
        %v1333 = vmul.f32 %v1268, %v1317
        %v1334 = vmul.f32 %v1270, %v1318
        %1335 = vrot.lane.b32.xlu0 %v837, 56
        %v1336 = vpop.permute.xlu0 %1335
        %1337 = vrot.lane.b32.xlu0 %v838, 56
        %v1338 = vpop.permute.xlu0 %1337
        %1339 = vrot.lane.b32.xlu0 %v839, 56
        %v1340 = vpop.permute.xlu0 %1339
        %1341 = vrot.lane.b32.xlu0 %v840, 56
        %v1342 = vpop.permute.xlu0 %1341
        %1343 = vrot.lane.b32.xlu0 %v841, 56
        %v1344 = vpop.permute.xlu0 %1343
        %1345 = vrot.lane.b32.xlu0 %v842, 56
        %v1346 = vpop.permute.xlu0 %1345
        %1347 = vrot.lane.b32.xlu0 %v843, 56
        %v1348 = vpop.permute.xlu0 %1347
        %1349 = vrot.lane.b32.xlu0 %v844, 56
        %v1350 = vpop.permute.xlu0 %1349
        %1351 = vrot.lane.b32.xlu0 %v845, 56
        %v1352 = vpop.permute.xlu0 %1351
        %1353 = vrot.lane.b32.xlu0 %v846, 56
        %v1354 = vpop.permute.xlu0 %1353
        %1355 = vrot.lane.b32.xlu0 %v847, 56
        %v1356 = vpop.permute.xlu0 %1355
        %1357 = vrot.lane.b32.xlu0 %v848, 56
        %v1358 = vpop.permute.xlu0 %1357
        %1359 = vrot.lane.b32.xlu0 %v849, 56
        %v1360 = vpop.permute.xlu0 %1359
        %1361 = vrot.lane.b32.xlu0 %v850, 56
        %v1362 = vpop.permute.xlu0 %1361
        %1363 = vrot.lane.b32.xlu0 %v851, 56
        %v1364 = vpop.permute.xlu0 %1363
        %1365 = vrot.lane.b32.xlu0 %v852, 56
        %v1366 = vpop.permute.xlu0 %1365
        %1383 = vmatprep.subr.mxu0 0.0
        %1384 = vmatpush1.msra.mxu0 %v1366
        %1385 = vmatprep.subr.mxu0 0.0
        %1386 = vmatpush1.msra.mxu0 %v1364
        %1387 = vmatprep.subr.mxu0 0.0
        %1388 = vmatpush1.msra.mxu0 %v1362
        %1389 = vmatprep.subr.mxu0 0.0
        %1390 = vmatpush1.msra.mxu0 %v1360
        %1391 = vmatprep.subr.mxu0 0.0
        %1392 = vmatpush1.msra.mxu0 %v1358
        %1393 = vmatprep.subr.mxu0 0.0
        %1394 = vmatpush1.msra.mxu0 %v1356
        %1395 = vmatprep.subr.mxu0 0.0
        %1396 = vmatpush1.msra.mxu0 %v1354
        %1397 = vmatprep.subr.mxu0 0.0
        %1398 = vmatpush1.msra.mxu0 %v1352
        %1399 = vmatprep.subr.mxu0 0.0
        %1400 = vmatpush1.msra.mxu0 %v1350
        %1401 = vmatprep.subr.mxu0 0.0
        %1402 = vmatpush1.msra.mxu0 %v1348
        %1403 = vmatprep.subr.mxu0 0.0
        %1404 = vmatpush1.msra.mxu0 %v1346
        %1405 = vmatprep.subr.mxu0 0.0
        %1406 = vmatpush1.msra.mxu0 %v1344
        %1407 = vmatprep.subr.mxu0 0.0
        %1408 = vmatpush1.msra.mxu0 %v1342
        %1409 = vmatprep.subr.mxu0 0.0
        %1410 = vmatpush1.msra.mxu0 %v1340
        %1411 = vmatprep.subr.mxu0 0.0
        %1412 = vmatpush1.msra.mxu0 %v1338
        %1413 = vmatprep.subr.mxu0 0.0
        %1414 = vmatpush1.msra.mxu0 %v1336
        %1415 = vmatprep.subr.mxu0 0.0
        %1416 = vmatpush2.msra.mxu0 0.0
        %1417 = vmatprep.subr.mxu0 0.0
        %1418 = vmatpush2.msra.mxu0 0.0
        %1419 = vmatprep.subr.mxu0 0.0
        %1420 = vmatpush2.msra.mxu0 0.0
        %1421 = vmatprep.subr.mxu0 0.0
        %1422 = vmatpush2.msra.mxu0 0.0
        %1423 = vmatprep.subr.mxu0 0.0
        %1424 = vmatpush2.msra.mxu0 0.0
        %1425 = vmatprep.subr.mxu0 0.0
        %1426 = vmatpush2.msra.mxu0 0.0
        %1427 = vmatprep.subr.mxu0 0.0
        %1428 = vmatpush2.msra.mxu0 0.0
        %1429 = vmatprep.subr.mxu0 0.0
        %1430 = vmatpush2.msra.mxu0 0.0
        %1431 = vmatprep.subr.mxu0 0.0
        %1432 = vmatpush2.msra.mxu0 0.0
        %1433 = vmatprep.subr.mxu0 0.0
        %1434 = vmatpush2.msra.mxu0 0.0
        %1435 = vmatprep.subr.mxu0 0.0
        %1436 = vmatpush2.msra.mxu0 0.0
        %1437 = vmatprep.subr.mxu0 0.0
        %1438 = vmatpush2.msra.mxu0 0.0
        %1439 = vmatprep.subr.mxu0 0.0
        %1440 = vmatpush2.msra.mxu0 0.0
        %1441 = vmatprep.subr.mxu0 0.0
        %1442 = vmatpush2.msra.mxu0 0.0
        %1443 = vmatprep.subr.mxu0 0.0
        %1444 = vmatpush2.msra.mxu0 0.0
        %1445 = vmatprep.subr.mxu0 0.0
        %1446 = vmatpush2.msra.mxu0 0.0
        %1447 = vmatprep.mubr.f32.mxu0 0.0
        %1448 = vmatmul.mubr.f32.gmra.mxu0 %v1319
        %v1449 = vpop.f32.mrf.mxu0
        %v1450 = vadd.f32 0.0, %v1449
        %v1451 = vpop.f32.mrf.mxu0
        %1452 = vmatprep.mubr.f32.mxu0 0.0
        %1453 = vmatmul.mubr.f32.gmra.mxu0 %v1320
        %v1454 = vpop.f32.mrf.mxu0
        %v1455 = vadd.f32 0.0, %v1454
        %v1456 = vpop.f32.mrf.mxu0
        %1457 = vmatprep.mubr.f32.mxu0 0.0
        %1458 = vmatmul.mubr.f32.gmra.mxu0 %v1321
        %v1459 = vpop.f32.mrf.mxu0
        %v1460 = vadd.f32 0.0, %v1459
        %v1461 = vpop.f32.mrf.mxu0
        %1462 = vmatprep.mubr.f32.mxu0 0.0
        %1463 = vmatmul.mubr.f32.gmra.mxu0 %v1322
        %v1464 = vpop.f32.mrf.mxu0
        %v1465 = vadd.f32 0.0, %v1464
        %v1466 = vpop.f32.mrf.mxu0
        %1467 = vmatprep.mubr.f32.mxu0 0.0
        %1468 = vmatmul.mubr.f32.gmra.mxu0 %v1323
        %v1469 = vpop.f32.mrf.mxu0
        %v1470 = vadd.f32 0.0, %v1469
        %v1471 = vpop.f32.mrf.mxu0
        %1472 = vmatprep.mubr.f32.mxu0 0.0
        %1473 = vmatmul.mubr.f32.gmra.mxu0 %v1324
        %v1474 = vpop.f32.mrf.mxu0
        %v1475 = vadd.f32 0.0, %v1474
        %v1476 = vpop.f32.mrf.mxu0
        %1477 = vmatprep.mubr.f32.mxu0 0.0
        %1478 = vmatmul.mubr.f32.gmra.mxu0 %v1325
        %v1479 = vpop.f32.mrf.mxu0
        %v1480 = vadd.f32 0.0, %v1479
        %v1481 = vpop.f32.mrf.mxu0
        %1482 = vmatprep.mubr.f32.mxu0 0.0
        %1483 = vmatmul.mubr.f32.gmra.mxu0 %v1326
        %v1484 = vpop.f32.mrf.mxu0
        %v1485 = vadd.f32 0.0, %v1484
        %v1486 = vpop.f32.mrf.mxu0
        %1487 = vmatprep.mubr.f32.mxu0 0.0
        %1488 = vmatmul.mubr.f32.gmra.mxu0 %v1327
        %v1489 = vpop.f32.mrf.mxu0
        %v1490 = vadd.f32 0.0, %v1489
        %v1491 = vpop.f32.mrf.mxu0
        %1492 = vmatprep.mubr.f32.mxu0 0.0
        %1493 = vmatmul.mubr.f32.gmra.mxu0 %v1328
        %v1494 = vpop.f32.mrf.mxu0
        %v1495 = vadd.f32 0.0, %v1494
        %v1496 = vpop.f32.mrf.mxu0
        %1497 = vmatprep.mubr.f32.mxu0 0.0
        %1498 = vmatmul.mubr.f32.gmra.mxu0 %v1329
        %v1499 = vpop.f32.mrf.mxu0
        %v1500 = vadd.f32 0.0, %v1499
        %v1501 = vpop.f32.mrf.mxu0
        %1502 = vmatprep.mubr.f32.mxu0 0.0
        %1503 = vmatmul.mubr.f32.gmra.mxu0 %v1330
        %v1504 = vpop.f32.mrf.mxu0
        %v1505 = vadd.f32 0.0, %v1504
        %v1506 = vpop.f32.mrf.mxu0
        %1507 = vmatprep.mubr.f32.mxu0 0.0
        %1508 = vmatmul.mubr.f32.gmra.mxu0 %v1331
        %v1509 = vpop.f32.mrf.mxu0
        %v1510 = vadd.f32 0.0, %v1509
        %v1511 = vpop.f32.mrf.mxu0
        %1512 = vmatprep.mubr.f32.mxu0 0.0
        %1513 = vmatmul.mubr.f32.gmra.mxu0 %v1332
        %v1514 = vpop.f32.mrf.mxu0
        %v1515 = vadd.f32 0.0, %v1514
        %v1516 = vpop.f32.mrf.mxu0
        %1517 = vmatprep.mubr.f32.mxu0 0.0
        %1518 = vmatmul.mubr.f32.gmra.mxu0 %v1333
        %v1519 = vpop.f32.mrf.mxu0
        %v1520 = vadd.f32 0.0, %v1519
        %v1521 = vpop.f32.mrf.mxu0
        %1522 = vmatprep.mubr.f32.mxu0 0.0
        %1523 = vmatmul.mubr.f32.gmra.mxu0 %v1334
        %v1524 = vpop.f32.mrf.mxu0
        %v1525 = vadd.f32 0.0, %v1524
        %v1526 = vpop.f32.mrf.mxu0
        %1527 = vdwg.mxu0
        %1544 = vrot.lane.b32.xlu0 %v1450, 8
        %v1545 = vpop.permute.xlu0 %1544
        %1546 = vrot.lane.b32.xlu0 %v1455, 8
        %v1547 = vpop.permute.xlu0 %1546
        %1548 = vrot.lane.b32.xlu0 %v1460, 8
        %v1549 = vpop.permute.xlu0 %1548
        %1550 = vrot.lane.b32.xlu0 %v1465, 8
        %v1551 = vpop.permute.xlu0 %1550
        %1552 = vrot.lane.b32.xlu0 %v1470, 8
        %v1553 = vpop.permute.xlu0 %1552
        %1554 = vrot.lane.b32.xlu0 %v1475, 8
        %v1555 = vpop.permute.xlu0 %1554
        %1556 = vrot.lane.b32.xlu0 %v1480, 8
        %v1557 = vpop.permute.xlu0 %1556
        %1558 = vrot.lane.b32.xlu0 %v1485, 8
        %v1559 = vpop.permute.xlu0 %1558
        %1560 = vrot.lane.b32.xlu0 %v1490, 8
        %v1561 = vpop.permute.xlu0 %1560
        %1562 = vrot.lane.b32.xlu0 %v1495, 8
        %v1563 = vpop.permute.xlu0 %1562
        %1564 = vrot.lane.b32.xlu0 %v1500, 8
        %v1565 = vpop.permute.xlu0 %1564
        %1566 = vrot.lane.b32.xlu0 %v1505, 8
        %v1567 = vpop.permute.xlu0 %1566
        %1568 = vrot.lane.b32.xlu0 %v1510, 8
        %v1569 = vpop.permute.xlu0 %1568
        %1570 = vrot.lane.b32.xlu0 %v1515, 8
        %v1571 = vpop.permute.xlu0 %1570
        %1572 = vrot.lane.b32.xlu0 %v1520, 8
        %v1573 = vpop.permute.xlu0 %1572
        %1574 = vrot.lane.b32.xlu0 %v1525, 8
        %v1575 = vpop.permute.xlu0 %1574
        %vm1592 = vcmask 130112
        %1593 = vst.msk [vmem:[%s160] sm:$0xff] %vm1592, %v1545
        %1594 = vst.msk [vmem:[%s160 + $0x8] sm:$0xff] %vm1592, %v1547
        %1595 = vst.msk [vmem:[%s160 + $0x10] sm:$0xff] %vm1592, %v1549
        %1596 = vst.msk [vmem:[%s160 + $0x18] sm:$0xff] %vm1592, %v1551
        %1597 = vst.msk [vmem:[%s160 + $0x20] sm:$0xff] %vm1592, %v1553
        %1598 = vst.msk [vmem:[%s160 + $0x28] sm:$0xff] %vm1592, %v1555
        %1599 = vst.msk [vmem:[%s160 + $0x30] sm:$0xff] %vm1592, %v1557
        %1600 = vst.msk [vmem:[%s160 + $0x38] sm:$0xff] %vm1592, %v1559
        %1601 = vst.msk [vmem:[%s160 + $0x40] sm:$0xff] %vm1592, %v1561
        %1602 = vst.msk [vmem:[%s160 + $0x48] sm:$0xff] %vm1592, %v1563
        %1603 = vst.msk [vmem:[%s160 + $0x50] sm:$0xff] %vm1592, %v1565
        %1604 = vst.msk [vmem:[%s160 + $0x58] sm:$0xff] %vm1592, %v1567
        %1605 = vst.msk [vmem:[%s160 + $0x60] sm:$0xff] %vm1592, %v1569
        %1606 = vst.msk [vmem:[%s160 + $0x68] sm:$0xff] %vm1592, %v1571
        %1607 = vst.msk [vmem:[%s160 + $0x70] sm:$0xff] %vm1592, %v1573
        %1608 = vst.msk [vmem:[%s160 + $0x78] sm:$0xff] %vm1592, %v1575
        %v1609 = vld [vmem:[%s154] sm:$0xff]
        %v1610 = vld [vmem:[%s154 + $0x8] sm:$0xff]
        %v1611 = vld [vmem:[%s154 + $0x10] sm:$0xff]
        %v1612 = vld [vmem:[%s154 + $0x18] sm:$0xff]
        %v1613 = vld [vmem:[%s154 + $0x20] sm:$0xff]
        %v1614 = vld [vmem:[%s154 + $0x28] sm:$0xff]
        %v1615 = vld [vmem:[%s154 + $0x30] sm:$0xff]
        %v1616 = vld [vmem:[%s154 + $0x38] sm:$0xff]
        %v1617 = vld [vmem:[%s154 + $0x40] sm:$0xff]
        %v1618 = vld [vmem:[%s154 + $0x48] sm:$0xff]
        %v1619 = vld [vmem:[%s154 + $0x50] sm:$0xff]
        %v1620 = vld [vmem:[%s154 + $0x58] sm:$0xff]
        %v1621 = vld [vmem:[%s154 + $0x60] sm:$0xff]
        %v1622 = vld [vmem:[%s154 + $0x68] sm:$0xff]
        %v1623 = vld [vmem:[%s154 + $0x70] sm:$0xff]
        %v1624 = vld [vmem:[%s154 + $0x78] sm:$0xff]
        %1641 = vrot.lane.b32.xlu0 %v1609, 112
        %v1642 = vpop.permute.xlu0 %1641
        %1643 = vrot.lane.b32.xlu0 %v1610, 112
        %v1644 = vpop.permute.xlu0 %1643
        %1645 = vrot.lane.b32.xlu0 %v1611, 112
        %v1646 = vpop.permute.xlu0 %1645
        %1647 = vrot.lane.b32.xlu0 %v1612, 112
        %v1648 = vpop.permute.xlu0 %1647
        %1649 = vrot.lane.b32.xlu0 %v1613, 112
        %v1650 = vpop.permute.xlu0 %1649
        %1651 = vrot.lane.b32.xlu0 %v1614, 112
        %v1652 = vpop.permute.xlu0 %1651
        %1653 = vrot.lane.b32.xlu0 %v1615, 112
        %v1654 = vpop.permute.xlu0 %1653
        %1655 = vrot.lane.b32.xlu0 %v1616, 112
        %v1656 = vpop.permute.xlu0 %1655
        %1657 = vrot.lane.b32.xlu0 %v1617, 112
        %v1658 = vpop.permute.xlu0 %1657
        %1659 = vrot.lane.b32.xlu0 %v1618, 112
        %v1660 = vpop.permute.xlu0 %1659
        %1661 = vrot.lane.b32.xlu0 %v1619, 112
        %v1662 = vpop.permute.xlu0 %1661
        %1663 = vrot.lane.b32.xlu0 %v1620, 112
        %v1664 = vpop.permute.xlu0 %1663
        %1665 = vrot.lane.b32.xlu0 %v1621, 112
        %v1666 = vpop.permute.xlu0 %1665
        %1667 = vrot.lane.b32.xlu0 %v1622, 112
        %v1668 = vpop.permute.xlu0 %1667
        %1669 = vrot.lane.b32.xlu0 %v1623, 112
        %v1670 = vpop.permute.xlu0 %1669
        %1671 = vrot.lane.b32.xlu0 %v1624, 112
        %v1672 = vpop.permute.xlu0 %1671
        %1673 = vrot.lane.b32.xlu0 %v1609, 80
        %v1674 = vpop.permute.xlu0 %1673
        %1675 = vrot.lane.b32.xlu0 %v1610, 80
        %v1676 = vpop.permute.xlu0 %1675
        %1677 = vrot.lane.b32.xlu0 %v1611, 80
        %v1678 = vpop.permute.xlu0 %1677
        %1679 = vrot.lane.b32.xlu0 %v1612, 80
        %v1680 = vpop.permute.xlu0 %1679
        %1681 = vrot.lane.b32.xlu0 %v1613, 80
        %v1682 = vpop.permute.xlu0 %1681
        %1683 = vrot.lane.b32.xlu0 %v1614, 80
        %v1684 = vpop.permute.xlu0 %1683
        %1685 = vrot.lane.b32.xlu0 %v1615, 80
        %v1686 = vpop.permute.xlu0 %1685
        %1687 = vrot.lane.b32.xlu0 %v1616, 80
        %v1688 = vpop.permute.xlu0 %1687
        %1689 = vrot.lane.b32.xlu0 %v1617, 80
        %v1690 = vpop.permute.xlu0 %1689
        %1691 = vrot.lane.b32.xlu0 %v1618, 80
        %v1692 = vpop.permute.xlu0 %1691
        %1693 = vrot.lane.b32.xlu0 %v1619, 80
        %v1694 = vpop.permute.xlu0 %1693
        %1695 = vrot.lane.b32.xlu0 %v1620, 80
        %v1696 = vpop.permute.xlu0 %1695
        %1697 = vrot.lane.b32.xlu0 %v1621, 80
        %v1698 = vpop.permute.xlu0 %1697
        %1699 = vrot.lane.b32.xlu0 %v1622, 80
        %v1700 = vpop.permute.xlu0 %1699
        %1701 = vrot.lane.b32.xlu0 %v1623, 80
        %v1702 = vpop.permute.xlu0 %1701
        %1703 = vrot.lane.b32.xlu0 %v1624, 80
        %v1704 = vpop.permute.xlu0 %1703
        %v1705 = vsel %vm226, %v1642, 0
        %v1707 = vsel %vm226, %v1644, 0
        %v1709 = vsel %vm226, %v1646, 0
        %v1711 = vsel %vm226, %v1648, 0
        %v1713 = vsel %vm226, %v1650, 0
        %v1715 = vsel %vm226, %v1652, 0
        %v1717 = vsel %vm226, %v1654, 0
        %v1719 = vsel %vm226, %v1656, 0
        %v1721 = vsel %vm226, %v1658, 0
        %v1723 = vsel %vm226, %v1660, 0
        %v1725 = vsel %vm226, %v1662, 0
        %v1727 = vsel %vm226, %v1664, 0
        %v1729 = vsel %vm226, %v1666, 0
        %v1731 = vsel %vm226, %v1668, 0
        %v1733 = vsel %vm226, %v1670, 0
        %v1735 = vsel %vm226, %v1672, 0
        %v1737 = vsel %vm226, %v1674, 0
        %v1739 = vsel %vm226, %v1676, 0
        %v1741 = vsel %vm226, %v1678, 0
        %v1743 = vsel %vm226, %v1680, 0
        %v1745 = vsel %vm226, %v1682, 0
        %v1747 = vsel %vm226, %v1684, 0
        %v1749 = vsel %vm226, %v1686, 0
        %v1751 = vsel %vm226, %v1688, 0
        %v1753 = vsel %vm226, %v1690, 0
        %v1755 = vsel %vm226, %v1692, 0
        %v1757 = vsel %vm226, %v1694, 0
        %v1759 = vsel %vm226, %v1696, 0
        %v1761 = vsel %vm226, %v1698, 0
        %v1763 = vsel %vm226, %v1700, 0
        %v1765 = vsel %vm226, %v1702, 0
        %v1767 = vsel %vm226, %v1704, 0
        %1769 = vmatprep.subr.mxu0 0.0
        %1770 = vmatpush1.xpose.msra.mxu0 %v1767
        %1771 = vmatprep.subr.mxu0 0.0
        %1772 = vmatpush1.xpose.msra.mxu0 %v1765
        %1773 = vmatprep.subr.mxu0 0.0
        %1774 = vmatpush1.xpose.msra.mxu0 %v1763
        %1775 = vmatprep.subr.mxu0 0.0
        %1776 = vmatpush1.xpose.msra.mxu0 %v1761
        %1777 = vmatprep.subr.mxu0 0.0
        %1778 = vmatpush1.xpose.msra.mxu0 %v1759
        %1779 = vmatprep.subr.mxu0 0.0
        %1780 = vmatpush1.xpose.msra.mxu0 %v1757
        %1781 = vmatprep.subr.mxu0 0.0
        %1782 = vmatpush1.xpose.msra.mxu0 %v1755
        %1783 = vmatprep.subr.mxu0 0.0
        %1784 = vmatpush1.xpose.msra.mxu0 %v1753
        %1785 = vmatprep.subr.mxu0 0.0
        %1786 = vmatpush1.xpose.msra.mxu0 %v1751
        %1787 = vmatprep.subr.mxu0 0.0
        %1788 = vmatpush1.xpose.msra.mxu0 %v1749
        %1789 = vmatprep.subr.mxu0 0.0
        %1790 = vmatpush1.xpose.msra.mxu0 %v1747
        %1791 = vmatprep.subr.mxu0 0.0
        %1792 = vmatpush1.xpose.msra.mxu0 %v1745
        %1793 = vmatprep.subr.mxu0 0.0
        %1794 = vmatpush1.xpose.msra.mxu0 %v1743
        %1795 = vmatprep.subr.mxu0 0.0
        %1796 = vmatpush1.xpose.msra.mxu0 %v1741
        %1797 = vmatprep.subr.mxu0 0.0
        %1798 = vmatpush1.xpose.msra.mxu0 %v1739
        %1799 = vmatprep.subr.mxu0 0.0
        %1800 = vmatpush1.xpose.msra.mxu0 %v1737
        %1801 = vmatprep.subr.mxu0 0.0
        %1802 = vmatpush2.xpose.msra.mxu0 0.0
        %1803 = vmatprep.subr.mxu0 0.0
        %1804 = vmatpush2.xpose.msra.mxu0 0.0
        %1805 = vmatprep.subr.mxu0 0.0
        %1806 = vmatpush2.xpose.msra.mxu0 0.0
        %1807 = vmatprep.subr.mxu0 0.0
        %1808 = vmatpush2.xpose.msra.mxu0 0.0
        %1809 = vmatprep.subr.mxu0 0.0
        %1810 = vmatpush2.xpose.msra.mxu0 0.0
        %1811 = vmatprep.subr.mxu0 0.0
        %1812 = vmatpush2.xpose.msra.mxu0 0.0
        %1813 = vmatprep.subr.mxu0 0.0
        %1814 = vmatpush2.xpose.msra.mxu0 0.0
        %1815 = vmatprep.subr.mxu0 0.0
        %1816 = vmatpush2.xpose.msra.mxu0 0.0
        %1817 = vmatprep.subr.mxu0 0.0
        %1818 = vmatpush2.xpose.msra.mxu0 0.0
        %1819 = vmatprep.subr.mxu0 0.0
        %1820 = vmatpush2.xpose.msra.mxu0 0.0
        %1821 = vmatprep.subr.mxu0 0.0
        %1822 = vmatpush2.xpose.msra.mxu0 0.0
        %1823 = vmatprep.subr.mxu0 0.0
        %1824 = vmatpush2.xpose.msra.mxu0 0.0
        %1825 = vmatprep.subr.mxu0 0.0
        %1826 = vmatpush2.xpose.msra.mxu0 0.0
        %1827 = vmatprep.subr.mxu0 0.0
        %1828 = vmatpush2.xpose.msra.mxu0 0.0
        %1829 = vmatprep.subr.mxu0 0.0
        %1830 = vmatpush2.xpose.msra.mxu0 0.0
        %1831 = vmatprep.subr.mxu0 0.0
        %1832 = vmatpush2.xpose.msra.mxu0 0.0
        %1833 = vmatprep.mubr.f32.mxu0 0.0
        %1834 = vmatmul.mubr.f32.gmra.mxu0 %v1705
        %v1835 = vpop.f32.mrf.mxu0
        %v1836 = vadd.f32 0.0, %v1835
        %v1837 = vpop.f32.mrf.mxu0
        %1838 = vmatprep.mubr.f32.mxu0 0.0
        %1839 = vmatmul.mubr.f32.gmra.mxu0 %v1707
        %v1840 = vpop.f32.mrf.mxu0
        %v1841 = vadd.f32 0.0, %v1840
        %v1842 = vpop.f32.mrf.mxu0
        %1843 = vmatprep.mubr.f32.mxu0 0.0
        %1844 = vmatmul.mubr.f32.gmra.mxu0 %v1709
        %v1845 = vpop.f32.mrf.mxu0
        %v1846 = vadd.f32 0.0, %v1845
        %v1847 = vpop.f32.mrf.mxu0
        %1848 = vmatprep.mubr.f32.mxu0 0.0
        %1849 = vmatmul.mubr.f32.gmra.mxu0 %v1711
        %v1850 = vpop.f32.mrf.mxu0
        %v1851 = vadd.f32 0.0, %v1850
        %v1852 = vpop.f32.mrf.mxu0
        %1853 = vmatprep.mubr.f32.mxu0 0.0
        %1854 = vmatmul.mubr.f32.gmra.mxu0 %v1713
        %v1855 = vpop.f32.mrf.mxu0
        %v1856 = vadd.f32 0.0, %v1855
        %v1857 = vpop.f32.mrf.mxu0
        %1858 = vmatprep.mubr.f32.mxu0 0.0
        %1859 = vmatmul.mubr.f32.gmra.mxu0 %v1715
        %v1860 = vpop.f32.mrf.mxu0
        %v1861 = vadd.f32 0.0, %v1860
        %v1862 = vpop.f32.mrf.mxu0
        %1863 = vmatprep.mubr.f32.mxu0 0.0
        %1864 = vmatmul.mubr.f32.gmra.mxu0 %v1717
        %v1865 = vpop.f32.mrf.mxu0
        %v1866 = vadd.f32 0.0, %v1865
        %v1867 = vpop.f32.mrf.mxu0
        %1868 = vmatprep.mubr.f32.mxu0 0.0
        %1869 = vmatmul.mubr.f32.gmra.mxu0 %v1719
        %v1870 = vpop.f32.mrf.mxu0
        %v1871 = vadd.f32 0.0, %v1870
        %v1872 = vpop.f32.mrf.mxu0
        %1873 = vmatprep.mubr.f32.mxu0 0.0
        %1874 = vmatmul.mubr.f32.gmra.mxu0 %v1721
        %v1875 = vpop.f32.mrf.mxu0
        %v1876 = vadd.f32 0.0, %v1875
        %v1877 = vpop.f32.mrf.mxu0
        %1878 = vmatprep.mubr.f32.mxu0 0.0
        %1879 = vmatmul.mubr.f32.gmra.mxu0 %v1723
        %v1880 = vpop.f32.mrf.mxu0
        %v1881 = vadd.f32 0.0, %v1880
        %v1882 = vpop.f32.mrf.mxu0
        %1883 = vmatprep.mubr.f32.mxu0 0.0
        %1884 = vmatmul.mubr.f32.gmra.mxu0 %v1725
        %v1885 = vpop.f32.mrf.mxu0
        %v1886 = vadd.f32 0.0, %v1885
        %v1887 = vpop.f32.mrf.mxu0
        %1888 = vmatprep.mubr.f32.mxu0 0.0
        %1889 = vmatmul.mubr.f32.gmra.mxu0 %v1727
        %v1890 = vpop.f32.mrf.mxu0
        %v1891 = vadd.f32 0.0, %v1890
        %v1892 = vpop.f32.mrf.mxu0
        %1893 = vmatprep.mubr.f32.mxu0 0.0
        %1894 = vmatmul.mubr.f32.gmra.mxu0 %v1729
        %v1895 = vpop.f32.mrf.mxu0
        %v1896 = vadd.f32 0.0, %v1895
        %v1897 = vpop.f32.mrf.mxu0
        %1898 = vmatprep.mubr.f32.mxu0 0.0
        %1899 = vmatmul.mubr.f32.gmra.mxu0 %v1731
        %v1900 = vpop.f32.mrf.mxu0
        %v1901 = vadd.f32 0.0, %v1900
        %v1902 = vpop.f32.mrf.mxu0
        %1903 = vmatprep.mubr.f32.mxu0 0.0
        %1904 = vmatmul.mubr.f32.gmra.mxu0 %v1733
        %v1905 = vpop.f32.mrf.mxu0
        %v1906 = vadd.f32 0.0, %v1905
        %v1907 = vpop.f32.mrf.mxu0
        %1908 = vmatprep.mubr.f32.mxu0 0.0
        %1909 = vmatmul.mubr.f32.gmra.mxu0 %v1735
        %v1910 = vpop.f32.mrf.mxu0
        %v1911 = vadd.f32 0.0, %v1910
        %v1912 = vpop.f32.mrf.mxu0
        %1913 = vdwg.mxu0
        %v1914 = vmul.f32 %v1836, 0.35355338
        %v1915 = vmul.f32 %v1841, 0.35355338
        %v1916 = vmul.f32 %v1846, 0.35355338
        %v1917 = vmul.f32 %v1851, 0.35355338
        %v1918 = vmul.f32 %v1856, 0.35355338
        %v1919 = vmul.f32 %v1861, 0.35355338
        %v1920 = vmul.f32 %v1866, 0.35355338
        %v1921 = vmul.f32 %v1871, 0.35355338
        %v1922 = vmul.f32 %v1876, 0.35355338
        %v1923 = vmul.f32 %v1881, 0.35355338
        %v1924 = vmul.f32 %v1886, 0.35355338
        %v1925 = vmul.f32 %v1891, 0.35355338
        %v1926 = vmul.f32 %v1896, 0.35355338
        %v1927 = vmul.f32 %v1901, 0.35355338
        %v1928 = vmul.f32 %v1906, 0.35355338
        %v1929 = vmul.f32 %v1911, 0.35355338
        %s1930 = scalar_lea.vmem [#allocation2], 256
        %v1931 = vld [vmem:[%s1930] sm:$0xff]
        %v1932 = vld [vmem:[%s1930 + $0x8] sm:$0xff]
        %v1933 = vld [vmem:[%s1930 + $0x10] sm:$0xff]
        %v1934 = vld [vmem:[%s1930 + $0x18] sm:$0xff]
        %v1935 = vld [vmem:[%s1930 + $0x20] sm:$0xff]
        %v1936 = vld [vmem:[%s1930 + $0x28] sm:$0xff]
        %v1937 = vld [vmem:[%s1930 + $0x30] sm:$0xff]
        %v1938 = vld [vmem:[%s1930 + $0x38] sm:$0xff]
        %v1939 = vld [vmem:[%s1930 + $0x40] sm:$0xff]
        %v1940 = vld [vmem:[%s1930 + $0x48] sm:$0xff]
        %v1941 = vld [vmem:[%s1930 + $0x50] sm:$0xff]
        %v1942 = vld [vmem:[%s1930 + $0x58] sm:$0xff]
        %v1943 = vld [vmem:[%s1930 + $0x60] sm:$0xff]
        %v1944 = vld [vmem:[%s1930 + $0x68] sm:$0xff]
        %v1945 = vld [vmem:[%s1930 + $0x70] sm:$0xff]
        %v1946 = vld [vmem:[%s1930 + $0x78] sm:$0xff]
        %v1947 = vadd.f32 %v1914, %v1931
        %v1948 = vadd.f32 %v1915, %v1932
        %v1949 = vadd.f32 %v1916, %v1933
        %v1950 = vadd.f32 %v1917, %v1934
        %v1951 = vadd.f32 %v1918, %v1935
        %v1952 = vadd.f32 %v1919, %v1936
        %v1953 = vadd.f32 %v1920, %v1937
        %v1954 = vadd.f32 %v1921, %v1938
        %v1955 = vadd.f32 %v1922, %v1939
        %v1956 = vadd.f32 %v1923, %v1940
        %v1957 = vadd.f32 %v1924, %v1941
        %v1958 = vadd.f32 %v1925, %v1942
        %v1959 = vadd.f32 %v1926, %v1943
        %v1960 = vadd.f32 %v1927, %v1944
        %v1961 = vadd.f32 %v1928, %v1945
        %v1962 = vadd.f32 %v1929, %v1946
        %1963 = vmax.xlane.f32.xlu0 %v1947
        %v1964 = vpop.xlane.xlu0 %1963
        %1965 = vmax.xlane.f32.xlu0 %v1948
        %v1966 = vpop.xlane.xlu0 %1965
        %1967 = vmax.xlane.f32.xlu0 %v1949
        %v1968 = vpop.xlane.xlu0 %1967
        %1969 = vmax.xlane.f32.xlu0 %v1950
        %v1970 = vpop.xlane.xlu0 %1969
        %1971 = vmax.xlane.f32.xlu0 %v1951
        %v1972 = vpop.xlane.xlu0 %1971
        %1973 = vmax.xlane.f32.xlu0 %v1952
        %v1974 = vpop.xlane.xlu0 %1973
        %1975 = vmax.xlane.f32.xlu0 %v1953
        %v1976 = vpop.xlane.xlu0 %1975
        %1977 = vmax.xlane.f32.xlu0 %v1954
        %v1978 = vpop.xlane.xlu0 %1977
        %1979 = vmax.xlane.f32.xlu0 %v1955
        %v1980 = vpop.xlane.xlu0 %1979
        %1981 = vmax.xlane.f32.xlu0 %v1956
        %v1982 = vpop.xlane.xlu0 %1981
        %1983 = vmax.xlane.f32.xlu0 %v1957
        %v1984 = vpop.xlane.xlu0 %1983
        %1985 = vmax.xlane.f32.xlu0 %v1958
        %v1986 = vpop.xlane.xlu0 %1985
        %1987 = vmax.xlane.f32.xlu0 %v1959
        %v1988 = vpop.xlane.xlu0 %1987
        %1989 = vmax.xlane.f32.xlu0 %v1960
        %v1990 = vpop.xlane.xlu0 %1989
        %1991 = vmax.xlane.f32.xlu0 %v1961
        %v1992 = vpop.xlane.xlu0 %1991
        %1993 = vmax.xlane.f32.xlu0 %v1962
        %v1994 = vpop.xlane.xlu0 %1993
        %v1995 = vsub.f32 %v1947, %v1964
        %v1996 = vsub.f32 %v1948, %v1966
        %v1997 = vsub.f32 %v1949, %v1968
        %v1998 = vsub.f32 %v1950, %v1970
        %v1999 = vsub.f32 %v1951, %v1972
        %v2000 = vsub.f32 %v1952, %v1974
        %v2001 = vsub.f32 %v1953, %v1976
        %v2002 = vsub.f32 %v1954, %v1978
        %v2003 = vsub.f32 %v1955, %v1980
        %v2004 = vsub.f32 %v1956, %v1982
        %v2005 = vsub.f32 %v1957, %v1984
        %v2006 = vsub.f32 %v1958, %v1986
        %v2007 = vsub.f32 %v1959, %v1988
        %v2008 = vsub.f32 %v1960, %v1990
        %v2009 = vsub.f32 %v1961, %v1992
        %v2010 = vsub.f32 %v1962, %v1994
        %v2011 = vmul.f32 %v1995, 1.442695
        %v2012 = vpow.pop %v2011
        %v2013 = vmul.f32 %v1996, 1.442695
        %v2014 = vpow.pop %v2013
        %v2015 = vmul.f32 %v1997, 1.442695
        %v2016 = vpow.pop %v2015
        %v2017 = vmul.f32 %v1998, 1.442695
        %v2018 = vpow.pop %v2017
        %v2019 = vmul.f32 %v1999, 1.442695
        %v2020 = vpow.pop %v2019
        %v2021 = vmul.f32 %v2000, 1.442695
        %v2022 = vpow.pop %v2021
        %v2023 = vmul.f32 %v2001, 1.442695
        %v2024 = vpow.pop %v2023
        %v2025 = vmul.f32 %v2002, 1.442695
        %v2026 = vpow.pop %v2025
        %v2027 = vmul.f32 %v2003, 1.442695
        %v2028 = vpow.pop %v2027
        %v2029 = vmul.f32 %v2004, 1.442695
        %v2030 = vpow.pop %v2029
        %v2031 = vmul.f32 %v2005, 1.442695
        %v2032 = vpow.pop %v2031
        %v2033 = vmul.f32 %v2006, 1.442695
        %v2034 = vpow.pop %v2033
        %v2035 = vmul.f32 %v2007, 1.442695
        %v2036 = vpow.pop %v2035
        %v2037 = vmul.f32 %v2008, 1.442695
        %v2038 = vpow.pop %v2037
        %v2039 = vmul.f32 %v2009, 1.442695
        %v2040 = vpow.pop %v2039
        %v2041 = vmul.f32 %v2010, 1.442695
        %v2042 = vpow.pop %v2041
        %2043 = vadd.xlane.f32.xlu0 %v2012
        %v2044 = vpop.xlane.xlu0 %2043
        %2045 = vadd.xlane.f32.xlu0 %v2014
        %v2046 = vpop.xlane.xlu0 %2045
        %2047 = vadd.xlane.f32.xlu0 %v2016
        %v2048 = vpop.xlane.xlu0 %2047
        %2049 = vadd.xlane.f32.xlu0 %v2018
        %v2050 = vpop.xlane.xlu0 %2049
        %2051 = vadd.xlane.f32.xlu0 %v2020
        %v2052 = vpop.xlane.xlu0 %2051
        %2053 = vadd.xlane.f32.xlu0 %v2022
        %v2054 = vpop.xlane.xlu0 %2053
        %2055 = vadd.xlane.f32.xlu0 %v2024
        %v2056 = vpop.xlane.xlu0 %2055
        %2057 = vadd.xlane.f32.xlu0 %v2026
        %v2058 = vpop.xlane.xlu0 %2057
        %2059 = vadd.xlane.f32.xlu0 %v2028
        %v2060 = vpop.xlane.xlu0 %2059
        %2061 = vadd.xlane.f32.xlu0 %v2030
        %v2062 = vpop.xlane.xlu0 %2061
        %2063 = vadd.xlane.f32.xlu0 %v2032
        %v2064 = vpop.xlane.xlu0 %2063
        %2065 = vadd.xlane.f32.xlu0 %v2034
        %v2066 = vpop.xlane.xlu0 %2065
        %2067 = vadd.xlane.f32.xlu0 %v2036
        %v2068 = vpop.xlane.xlu0 %2067
        %2069 = vadd.xlane.f32.xlu0 %v2038
        %v2070 = vpop.xlane.xlu0 %2069
        %2071 = vadd.xlane.f32.xlu0 %v2040
        %v2072 = vpop.xlane.xlu0 %2071
        %2073 = vadd.xlane.f32.xlu0 %v2042
        %v2074 = vpop.xlane.xlu0 %2073
        %v2075 = vrcp.pop %v2044
        %v2076 = vrcp.pop %v2046
        %v2077 = vrcp.pop %v2048
        %v2078 = vrcp.pop %v2050
        %v2079 = vrcp.pop %v2052
        %v2080 = vrcp.pop %v2054
        %v2081 = vrcp.pop %v2056
        %v2082 = vrcp.pop %v2058
        %v2083 = vrcp.pop %v2060
        %v2084 = vrcp.pop %v2062
        %v2085 = vrcp.pop %v2064
        %v2086 = vrcp.pop %v2066
        %v2087 = vrcp.pop %v2068
        %v2088 = vrcp.pop %v2070
        %v2089 = vrcp.pop %v2072
        %v2090 = vrcp.pop %v2074
        %v2091 = vmul.f32 %v2012, %v2075
        %v2092 = vmul.f32 %v2014, %v2076
        %v2093 = vmul.f32 %v2016, %v2077
        %v2094 = vmul.f32 %v2018, %v2078
        %v2095 = vmul.f32 %v2020, %v2079
        %v2096 = vmul.f32 %v2022, %v2080
        %v2097 = vmul.f32 %v2024, %v2081
        %v2098 = vmul.f32 %v2026, %v2082
        %v2099 = vmul.f32 %v2028, %v2083
        %v2100 = vmul.f32 %v2030, %v2084
        %v2101 = vmul.f32 %v2032, %v2085
        %v2102 = vmul.f32 %v2034, %v2086
        %v2103 = vmul.f32 %v2036, %v2087
        %v2104 = vmul.f32 %v2038, %v2088
        %v2105 = vmul.f32 %v2040, %v2089
        %v2106 = vmul.f32 %v2042, %v2090
        %2107 = vrot.lane.b32.xlu0 %v1609, 48
        %v2108 = vpop.permute.xlu0 %2107
        %2109 = vrot.lane.b32.xlu0 %v1610, 48
        %v2110 = vpop.permute.xlu0 %2109
        %2111 = vrot.lane.b32.xlu0 %v1611, 48
        %v2112 = vpop.permute.xlu0 %2111
        %2113 = vrot.lane.b32.xlu0 %v1612, 48
        %v2114 = vpop.permute.xlu0 %2113
        %2115 = vrot.lane.b32.xlu0 %v1613, 48
        %v2116 = vpop.permute.xlu0 %2115
        %2117 = vrot.lane.b32.xlu0 %v1614, 48
        %v2118 = vpop.permute.xlu0 %2117
        %2119 = vrot.lane.b32.xlu0 %v1615, 48
        %v2120 = vpop.permute.xlu0 %2119
        %2121 = vrot.lane.b32.xlu0 %v1616, 48
        %v2122 = vpop.permute.xlu0 %2121
        %2123 = vrot.lane.b32.xlu0 %v1617, 48
        %v2124 = vpop.permute.xlu0 %2123
        %2125 = vrot.lane.b32.xlu0 %v1618, 48
        %v2126 = vpop.permute.xlu0 %2125
        %2127 = vrot.lane.b32.xlu0 %v1619, 48
        %v2128 = vpop.permute.xlu0 %2127
        %2129 = vrot.lane.b32.xlu0 %v1620, 48
        %v2130 = vpop.permute.xlu0 %2129
        %2131 = vrot.lane.b32.xlu0 %v1621, 48
        %v2132 = vpop.permute.xlu0 %2131
        %2133 = vrot.lane.b32.xlu0 %v1622, 48
        %v2134 = vpop.permute.xlu0 %2133
        %2135 = vrot.lane.b32.xlu0 %v1623, 48
        %v2136 = vpop.permute.xlu0 %2135
        %2137 = vrot.lane.b32.xlu0 %v1624, 48
        %v2138 = vpop.permute.xlu0 %2137
        %2155 = vmatprep.subr.mxu0 0.0
        %2156 = vmatpush1.msra.mxu0 %v2138
        %2157 = vmatprep.subr.mxu0 0.0
        %2158 = vmatpush1.msra.mxu0 %v2136
        %2159 = vmatprep.subr.mxu0 0.0
        %2160 = vmatpush1.msra.mxu0 %v2134
        %2161 = vmatprep.subr.mxu0 0.0
        %2162 = vmatpush1.msra.mxu0 %v2132
        %2163 = vmatprep.subr.mxu0 0.0
        %2164 = vmatpush1.msra.mxu0 %v2130
        %2165 = vmatprep.subr.mxu0 0.0
        %2166 = vmatpush1.msra.mxu0 %v2128
        %2167 = vmatprep.subr.mxu0 0.0
        %2168 = vmatpush1.msra.mxu0 %v2126
        %2169 = vmatprep.subr.mxu0 0.0
        %2170 = vmatpush1.msra.mxu0 %v2124
        %2171 = vmatprep.subr.mxu0 0.0
        %2172 = vmatpush1.msra.mxu0 %v2122
        %2173 = vmatprep.subr.mxu0 0.0
        %2174 = vmatpush1.msra.mxu0 %v2120
        %2175 = vmatprep.subr.mxu0 0.0
        %2176 = vmatpush1.msra.mxu0 %v2118
        %2177 = vmatprep.subr.mxu0 0.0
        %2178 = vmatpush1.msra.mxu0 %v2116
        %2179 = vmatprep.subr.mxu0 0.0
        %2180 = vmatpush1.msra.mxu0 %v2114
        %2181 = vmatprep.subr.mxu0 0.0
        %2182 = vmatpush1.msra.mxu0 %v2112
        %2183 = vmatprep.subr.mxu0 0.0
        %2184 = vmatpush1.msra.mxu0 %v2110
        %2185 = vmatprep.subr.mxu0 0.0
        %2186 = vmatpush1.msra.mxu0 %v2108
        %2187 = vmatprep.subr.mxu0 0.0
        %2188 = vmatpush2.msra.mxu0 0.0
        %2189 = vmatprep.subr.mxu0 0.0
        %2190 = vmatpush2.msra.mxu0 0.0
        %2191 = vmatprep.subr.mxu0 0.0
        %2192 = vmatpush2.msra.mxu0 0.0
        %2193 = vmatprep.subr.mxu0 0.0
        %2194 = vmatpush2.msra.mxu0 0.0
        %2195 = vmatprep.subr.mxu0 0.0
        %2196 = vmatpush2.msra.mxu0 0.0
        %2197 = vmatprep.subr.mxu0 0.0
        %2198 = vmatpush2.msra.mxu0 0.0
        %2199 = vmatprep.subr.mxu0 0.0
        %2200 = vmatpush2.msra.mxu0 0.0
        %2201 = vmatprep.subr.mxu0 0.0
        %2202 = vmatpush2.msra.mxu0 0.0
        %2203 = vmatprep.subr.mxu0 0.0
        %2204 = vmatpush2.msra.mxu0 0.0
        %2205 = vmatprep.subr.mxu0 0.0
        %2206 = vmatpush2.msra.mxu0 0.0
        %2207 = vmatprep.subr.mxu0 0.0
        %2208 = vmatpush2.msra.mxu0 0.0
        %2209 = vmatprep.subr.mxu0 0.0
        %2210 = vmatpush2.msra.mxu0 0.0
        %2211 = vmatprep.subr.mxu0 0.0
        %2212 = vmatpush2.msra.mxu0 0.0
        %2213 = vmatprep.subr.mxu0 0.0
        %2214 = vmatpush2.msra.mxu0 0.0
        %2215 = vmatprep.subr.mxu0 0.0
        %2216 = vmatpush2.msra.mxu0 0.0
        %2217 = vmatprep.subr.mxu0 0.0
        %2218 = vmatpush2.msra.mxu0 0.0
        %2219 = vmatprep.mubr.f32.mxu0 0.0
        %2220 = vmatmul.mubr.f32.gmra.mxu0 %v2091
        %v2221 = vpop.f32.mrf.mxu0
        %v2222 = vadd.f32 0.0, %v2221
        %v2223 = vpop.f32.mrf.mxu0
        %2224 = vmatprep.mubr.f32.mxu0 0.0
        %2225 = vmatmul.mubr.f32.gmra.mxu0 %v2092
        %v2226 = vpop.f32.mrf.mxu0
        %v2227 = vadd.f32 0.0, %v2226
        %v2228 = vpop.f32.mrf.mxu0
        %2229 = vmatprep.mubr.f32.mxu0 0.0
        %2230 = vmatmul.mubr.f32.gmra.mxu0 %v2093
        %v2231 = vpop.f32.mrf.mxu0
        %v2232 = vadd.f32 0.0, %v2231
        %v2233 = vpop.f32.mrf.mxu0
        %2234 = vmatprep.mubr.f32.mxu0 0.0
        %2235 = vmatmul.mubr.f32.gmra.mxu0 %v2094
        %v2236 = vpop.f32.mrf.mxu0
        %v2237 = vadd.f32 0.0, %v2236
        %v2238 = vpop.f32.mrf.mxu0
        %2239 = vmatprep.mubr.f32.mxu0 0.0
        %2240 = vmatmul.mubr.f32.gmra.mxu0 %v2095
        %v2241 = vpop.f32.mrf.mxu0
        %v2242 = vadd.f32 0.0, %v2241
        %v2243 = vpop.f32.mrf.mxu0
        %2244 = vmatprep.mubr.f32.mxu0 0.0
        %2245 = vmatmul.mubr.f32.gmra.mxu0 %v2096
        %v2246 = vpop.f32.mrf.mxu0
        %v2247 = vadd.f32 0.0, %v2246
        %v2248 = vpop.f32.mrf.mxu0
        %2249 = vmatprep.mubr.f32.mxu0 0.0
        %2250 = vmatmul.mubr.f32.gmra.mxu0 %v2097
        %v2251 = vpop.f32.mrf.mxu0
        %v2252 = vadd.f32 0.0, %v2251
        %v2253 = vpop.f32.mrf.mxu0
        %2254 = vmatprep.mubr.f32.mxu0 0.0
        %2255 = vmatmul.mubr.f32.gmra.mxu0 %v2098
        %v2256 = vpop.f32.mrf.mxu0
        %v2257 = vadd.f32 0.0, %v2256
        %v2258 = vpop.f32.mrf.mxu0
        %2259 = vmatprep.mubr.f32.mxu0 0.0
        %2260 = vmatmul.mubr.f32.gmra.mxu0 %v2099
        %v2261 = vpop.f32.mrf.mxu0
        %v2262 = vadd.f32 0.0, %v2261
        %v2263 = vpop.f32.mrf.mxu0
        %2264 = vmatprep.mubr.f32.mxu0 0.0
        %2265 = vmatmul.mubr.f32.gmra.mxu0 %v2100
        %v2266 = vpop.f32.mrf.mxu0
        %v2267 = vadd.f32 0.0, %v2266
        %v2268 = vpop.f32.mrf.mxu0
        %2269 = vmatprep.mubr.f32.mxu0 0.0
        %2270 = vmatmul.mubr.f32.gmra.mxu0 %v2101
        %v2271 = vpop.f32.mrf.mxu0
        %v2272 = vadd.f32 0.0, %v2271
        %v2273 = vpop.f32.mrf.mxu0
        %2274 = vmatprep.mubr.f32.mxu0 0.0
        %2275 = vmatmul.mubr.f32.gmra.mxu0 %v2102
        %v2276 = vpop.f32.mrf.mxu0
        %v2277 = vadd.f32 0.0, %v2276
        %v2278 = vpop.f32.mrf.mxu0
        %2279 = vmatprep.mubr.f32.mxu0 0.0
        %2280 = vmatmul.mubr.f32.gmra.mxu0 %v2103
        %v2281 = vpop.f32.mrf.mxu0
        %v2282 = vadd.f32 0.0, %v2281
        %v2283 = vpop.f32.mrf.mxu0
        %2284 = vmatprep.mubr.f32.mxu0 0.0
        %2285 = vmatmul.mubr.f32.gmra.mxu0 %v2104
        %v2286 = vpop.f32.mrf.mxu0
        %v2287 = vadd.f32 0.0, %v2286
        %v2288 = vpop.f32.mrf.mxu0
        %2289 = vmatprep.mubr.f32.mxu0 0.0
        %2290 = vmatmul.mubr.f32.gmra.mxu0 %v2105
        %v2291 = vpop.f32.mrf.mxu0
        %v2292 = vadd.f32 0.0, %v2291
        %v2293 = vpop.f32.mrf.mxu0
        %2294 = vmatprep.mubr.f32.mxu0 0.0
        %2295 = vmatmul.mubr.f32.gmra.mxu0 %v2106
        %v2296 = vpop.f32.mrf.mxu0
        %v2297 = vadd.f32 0.0, %v2296
        %v2298 = vpop.f32.mrf.mxu0
        %2299 = vdwg.mxu0
        %2316 = vrot.lane.b32.xlu0 %v2222, 16
        %v2317 = vpop.permute.xlu0 %2316
        %2318 = vrot.lane.b32.xlu0 %v2227, 16
        %v2319 = vpop.permute.xlu0 %2318
        %2320 = vrot.lane.b32.xlu0 %v2232, 16
        %v2321 = vpop.permute.xlu0 %2320
        %2322 = vrot.lane.b32.xlu0 %v2237, 16
        %v2323 = vpop.permute.xlu0 %2322
        %2324 = vrot.lane.b32.xlu0 %v2242, 16
        %v2325 = vpop.permute.xlu0 %2324
        %2326 = vrot.lane.b32.xlu0 %v2247, 16
        %v2327 = vpop.permute.xlu0 %2326
        %2328 = vrot.lane.b32.xlu0 %v2252, 16
        %v2329 = vpop.permute.xlu0 %2328
        %2330 = vrot.lane.b32.xlu0 %v2257, 16
        %v2331 = vpop.permute.xlu0 %2330
        %2332 = vrot.lane.b32.xlu0 %v2262, 16
        %v2333 = vpop.permute.xlu0 %2332
        %2334 = vrot.lane.b32.xlu0 %v2267, 16
        %v2335 = vpop.permute.xlu0 %2334
        %2336 = vrot.lane.b32.xlu0 %v2272, 16
        %v2337 = vpop.permute.xlu0 %2336
        %2338 = vrot.lane.b32.xlu0 %v2277, 16
        %v2339 = vpop.permute.xlu0 %2338
        %2340 = vrot.lane.b32.xlu0 %v2282, 16
        %v2341 = vpop.permute.xlu0 %2340
        %2342 = vrot.lane.b32.xlu0 %v2287, 16
        %v2343 = vpop.permute.xlu0 %2342
        %2344 = vrot.lane.b32.xlu0 %v2292, 16
        %v2345 = vpop.permute.xlu0 %2344
        %2346 = vrot.lane.b32.xlu0 %v2297, 16
        %v2347 = vpop.permute.xlu0 %2346
        %vm2364 = vcmask 195712
        %2365 = vst.msk [vmem:[%s160] sm:$0xff] %vm2364, %v2317
        %2366 = vst.msk [vmem:[%s160 + $0x8] sm:$0xff] %vm2364, %v2319
        %2367 = vst.msk [vmem:[%s160 + $0x10] sm:$0xff] %vm2364, %v2321
        %2368 = vst.msk [vmem:[%s160 + $0x18] sm:$0xff] %vm2364, %v2323
        %2369 = vst.msk [vmem:[%s160 + $0x20] sm:$0xff] %vm2364, %v2325
        %2370 = vst.msk [vmem:[%s160 + $0x28] sm:$0xff] %vm2364, %v2327
        %2371 = vst.msk [vmem:[%s160 + $0x30] sm:$0xff] %vm2364, %v2329
        %2372 = vst.msk [vmem:[%s160 + $0x38] sm:$0xff] %vm2364, %v2331
        %2373 = vst.msk [vmem:[%s160 + $0x40] sm:$0xff] %vm2364, %v2333
        %2374 = vst.msk [vmem:[%s160 + $0x48] sm:$0xff] %vm2364, %v2335
        %2375 = vst.msk [vmem:[%s160 + $0x50] sm:$0xff] %vm2364, %v2337
        %2376 = vst.msk [vmem:[%s160 + $0x58] sm:$0xff] %vm2364, %v2339
        %2377 = vst.msk [vmem:[%s160 + $0x60] sm:$0xff] %vm2364, %v2341
        %2378 = vst.msk [vmem:[%s160 + $0x68] sm:$0xff] %vm2364, %v2343
        %2379 = vst.msk [vmem:[%s160 + $0x70] sm:$0xff] %vm2364, %v2345
        %2380 = vst.msk [vmem:[%s160 + $0x78] sm:$0xff] %vm2364, %v2347
        %v2381 = vld [vmem:[%s154] sm:$0xff]
        %v2382 = vld [vmem:[%s154 + $0x8] sm:$0xff]
        %v2383 = vld [vmem:[%s154 + $0x10] sm:$0xff]
        %v2384 = vld [vmem:[%s154 + $0x18] sm:$0xff]
        %v2385 = vld [vmem:[%s154 + $0x20] sm:$0xff]
        %v2386 = vld [vmem:[%s154 + $0x28] sm:$0xff]
        %v2387 = vld [vmem:[%s154 + $0x30] sm:$0xff]
        %v2388 = vld [vmem:[%s154 + $0x38] sm:$0xff]
        %v2389 = vld [vmem:[%s154 + $0x40] sm:$0xff]
        %v2390 = vld [vmem:[%s154 + $0x48] sm:$0xff]
        %v2391 = vld [vmem:[%s154 + $0x50] sm:$0xff]
        %v2392 = vld [vmem:[%s154 + $0x58] sm:$0xff]
        %v2393 = vld [vmem:[%s154 + $0x60] sm:$0xff]
        %v2394 = vld [vmem:[%s154 + $0x68] sm:$0xff]
        %v2395 = vld [vmem:[%s154 + $0x70] sm:$0xff]
        %v2396 = vld [vmem:[%s154 + $0x78] sm:$0xff]
        %2413 = vrot.lane.b32.xlu0 %v2381, 104
        %v2414 = vpop.permute.xlu0 %2413
        %2415 = vrot.lane.b32.xlu0 %v2382, 104
        %v2416 = vpop.permute.xlu0 %2415
        %2417 = vrot.lane.b32.xlu0 %v2383, 104
        %v2418 = vpop.permute.xlu0 %2417
        %2419 = vrot.lane.b32.xlu0 %v2384, 104
        %v2420 = vpop.permute.xlu0 %2419
        %2421 = vrot.lane.b32.xlu0 %v2385, 104
        %v2422 = vpop.permute.xlu0 %2421
        %2423 = vrot.lane.b32.xlu0 %v2386, 104
        %v2424 = vpop.permute.xlu0 %2423
        %2425 = vrot.lane.b32.xlu0 %v2387, 104
        %v2426 = vpop.permute.xlu0 %2425
        %2427 = vrot.lane.b32.xlu0 %v2388, 104
        %v2428 = vpop.permute.xlu0 %2427
        %2429 = vrot.lane.b32.xlu0 %v2389, 104
        %v2430 = vpop.permute.xlu0 %2429
        %2431 = vrot.lane.b32.xlu0 %v2390, 104
        %v2432 = vpop.permute.xlu0 %2431
        %2433 = vrot.lane.b32.xlu0 %v2391, 104
        %v2434 = vpop.permute.xlu0 %2433
        %2435 = vrot.lane.b32.xlu0 %v2392, 104
        %v2436 = vpop.permute.xlu0 %2435
        %2437 = vrot.lane.b32.xlu0 %v2393, 104
        %v2438 = vpop.permute.xlu0 %2437
        %2439 = vrot.lane.b32.xlu0 %v2394, 104
        %v2440 = vpop.permute.xlu0 %2439
        %2441 = vrot.lane.b32.xlu0 %v2395, 104
        %v2442 = vpop.permute.xlu0 %2441
        %2443 = vrot.lane.b32.xlu0 %v2396, 104
        %v2444 = vpop.permute.xlu0 %2443
        %2445 = vrot.lane.b32.xlu0 %v2381, 72
        %v2446 = vpop.permute.xlu0 %2445
        %2447 = vrot.lane.b32.xlu0 %v2382, 72
        %v2448 = vpop.permute.xlu0 %2447
        %2449 = vrot.lane.b32.xlu0 %v2383, 72
        %v2450 = vpop.permute.xlu0 %2449
        %2451 = vrot.lane.b32.xlu0 %v2384, 72
        %v2452 = vpop.permute.xlu0 %2451
        %2453 = vrot.lane.b32.xlu0 %v2385, 72
        %v2454 = vpop.permute.xlu0 %2453
        %2455 = vrot.lane.b32.xlu0 %v2386, 72
        %v2456 = vpop.permute.xlu0 %2455
        %2457 = vrot.lane.b32.xlu0 %v2387, 72
        %v2458 = vpop.permute.xlu0 %2457
        %2459 = vrot.lane.b32.xlu0 %v2388, 72
        %v2460 = vpop.permute.xlu0 %2459
        %2461 = vrot.lane.b32.xlu0 %v2389, 72
        %v2462 = vpop.permute.xlu0 %2461
        %2463 = vrot.lane.b32.xlu0 %v2390, 72
        %v2464 = vpop.permute.xlu0 %2463
        %2465 = vrot.lane.b32.xlu0 %v2391, 72
        %v2466 = vpop.permute.xlu0 %2465
        %2467 = vrot.lane.b32.xlu0 %v2392, 72
        %v2468 = vpop.permute.xlu0 %2467
        %2469 = vrot.lane.b32.xlu0 %v2393, 72
        %v2470 = vpop.permute.xlu0 %2469
        %2471 = vrot.lane.b32.xlu0 %v2394, 72
        %v2472 = vpop.permute.xlu0 %2471
        %2473 = vrot.lane.b32.xlu0 %v2395, 72
        %v2474 = vpop.permute.xlu0 %2473
        %2475 = vrot.lane.b32.xlu0 %v2396, 72
        %v2476 = vpop.permute.xlu0 %2475
        %v2477 = vsel %vm226, %v2414, 0
        %v2479 = vsel %vm226, %v2416, 0
        %v2481 = vsel %vm226, %v2418, 0
        %v2483 = vsel %vm226, %v2420, 0
        %v2485 = vsel %vm226, %v2422, 0
        %v2487 = vsel %vm226, %v2424, 0
        %v2489 = vsel %vm226, %v2426, 0
        %v2491 = vsel %vm226, %v2428, 0
        %v2493 = vsel %vm226, %v2430, 0
        %v2495 = vsel %vm226, %v2432, 0
        %v2497 = vsel %vm226, %v2434, 0
        %v2499 = vsel %vm226, %v2436, 0
        %v2501 = vsel %vm226, %v2438, 0
        %v2503 = vsel %vm226, %v2440, 0
        %v2505 = vsel %vm226, %v2442, 0
        %v2507 = vsel %vm226, %v2444, 0
        %v2509 = vsel %vm226, %v2446, 0
        %v2511 = vsel %vm226, %v2448, 0
        %v2513 = vsel %vm226, %v2450, 0
        %v2515 = vsel %vm226, %v2452, 0
        %v2517 = vsel %vm226, %v2454, 0
        %v2519 = vsel %vm226, %v2456, 0
        %v2521 = vsel %vm226, %v2458, 0
        %v2523 = vsel %vm226, %v2460, 0
        %v2525 = vsel %vm226, %v2462, 0
        %v2527 = vsel %vm226, %v2464, 0
        %v2529 = vsel %vm226, %v2466, 0
        %v2531 = vsel %vm226, %v2468, 0
        %v2533 = vsel %vm226, %v2470, 0
        %v2535 = vsel %vm226, %v2472, 0
        %v2537 = vsel %vm226, %v2474, 0
        %v2539 = vsel %vm226, %v2476, 0
        %2541 = vmatprep.subr.mxu0 0.0
        %2542 = vmatpush1.xpose.msra.mxu0 %v2539
        %2543 = vmatprep.subr.mxu0 0.0
        %2544 = vmatpush1.xpose.msra.mxu0 %v2537
        %2545 = vmatprep.subr.mxu0 0.0
        %2546 = vmatpush1.xpose.msra.mxu0 %v2535
        %2547 = vmatprep.subr.mxu0 0.0
        %2548 = vmatpush1.xpose.msra.mxu0 %v2533
        %2549 = vmatprep.subr.mxu0 0.0
        %2550 = vmatpush1.xpose.msra.mxu0 %v2531
        %2551 = vmatprep.subr.mxu0 0.0
        %2552 = vmatpush1.xpose.msra.mxu0 %v2529
        %2553 = vmatprep.subr.mxu0 0.0
        %2554 = vmatpush1.xpose.msra.mxu0 %v2527
        %2555 = vmatprep.subr.mxu0 0.0
        %2556 = vmatpush1.xpose.msra.mxu0 %v2525
        %2557 = vmatprep.subr.mxu0 0.0
        %2558 = vmatpush1.xpose.msra.mxu0 %v2523
        %2559 = vmatprep.subr.mxu0 0.0
        %2560 = vmatpush1.xpose.msra.mxu0 %v2521
        %2561 = vmatprep.subr.mxu0 0.0
        %2562 = vmatpush1.xpose.msra.mxu0 %v2519
        %2563 = vmatprep.subr.mxu0 0.0
        %2564 = vmatpush1.xpose.msra.mxu0 %v2517
        %2565 = vmatprep.subr.mxu0 0.0
        %2566 = vmatpush1.xpose.msra.mxu0 %v2515
        %2567 = vmatprep.subr.mxu0 0.0
        %2568 = vmatpush1.xpose.msra.mxu0 %v2513
        %2569 = vmatprep.subr.mxu0 0.0
        %2570 = vmatpush1.xpose.msra.mxu0 %v2511
        %2571 = vmatprep.subr.mxu0 0.0
        %2572 = vmatpush1.xpose.msra.mxu0 %v2509
        %2573 = vmatprep.subr.mxu0 0.0
        %2574 = vmatpush2.xpose.msra.mxu0 0.0
        %2575 = vmatprep.subr.mxu0 0.0
        %2576 = vmatpush2.xpose.msra.mxu0 0.0
        %2577 = vmatprep.subr.mxu0 0.0
        %2578 = vmatpush2.xpose.msra.mxu0 0.0
        %2579 = vmatprep.subr.mxu0 0.0
        %2580 = vmatpush2.xpose.msra.mxu0 0.0
        %2581 = vmatprep.subr.mxu0 0.0
        %2582 = vmatpush2.xpose.msra.mxu0 0.0
        %2583 = vmatprep.subr.mxu0 0.0
        %2584 = vmatpush2.xpose.msra.mxu0 0.0
        %2585 = vmatprep.subr.mxu0 0.0
        %2586 = vmatpush2.xpose.msra.mxu0 0.0
        %2587 = vmatprep.subr.mxu0 0.0
        %2588 = vmatpush2.xpose.msra.mxu0 0.0
        %2589 = vmatprep.subr.mxu0 0.0
        %2590 = vmatpush2.xpose.msra.mxu0 0.0
        %2591 = vmatprep.subr.mxu0 0.0
        %2592 = vmatpush2.xpose.msra.mxu0 0.0
        %2593 = vmatprep.subr.mxu0 0.0
        %2594 = vmatpush2.xpose.msra.mxu0 0.0
        %2595 = vmatprep.subr.mxu0 0.0
        %2596 = vmatpush2.xpose.msra.mxu0 0.0
        %2597 = vmatprep.subr.mxu0 0.0
        %2598 = vmatpush2.xpose.msra.mxu0 0.0
        %2599 = vmatprep.subr.mxu0 0.0
        %2600 = vmatpush2.xpose.msra.mxu0 0.0
        %2601 = vmatprep.subr.mxu0 0.0
        %2602 = vmatpush2.xpose.msra.mxu0 0.0
        %2603 = vmatprep.subr.mxu0 0.0
        %2604 = vmatpush2.xpose.msra.mxu0 0.0
        %2605 = vmatprep.mubr.f32.mxu0 0.0
        %2606 = vmatmul.mubr.f32.gmra.mxu0 %v2477
        %v2607 = vpop.f32.mrf.mxu0
        %v2608 = vadd.f32 0.0, %v2607
        %v2609 = vpop.f32.mrf.mxu0
        %2610 = vmatprep.mubr.f32.mxu0 0.0
        %2611 = vmatmul.mubr.f32.gmra.mxu0 %v2479
        %v2612 = vpop.f32.mrf.mxu0
        %v2613 = vadd.f32 0.0, %v2612
        %v2614 = vpop.f32.mrf.mxu0
        %2615 = vmatprep.mubr.f32.mxu0 0.0
        %2616 = vmatmul.mubr.f32.gmra.mxu0 %v2481
        %v2617 = vpop.f32.mrf.mxu0
        %v2618 = vadd.f32 0.0, %v2617
        %v2619 = vpop.f32.mrf.mxu0
        %2620 = vmatprep.mubr.f32.mxu0 0.0
        %2621 = vmatmul.mubr.f32.gmra.mxu0 %v2483
        %v2622 = vpop.f32.mrf.mxu0
        %v2623 = vadd.f32 0.0, %v2622
        %v2624 = vpop.f32.mrf.mxu0
        %2625 = vmatprep.mubr.f32.mxu0 0.0
        %2626 = vmatmul.mubr.f32.gmra.mxu0 %v2485
        %v2627 = vpop.f32.mrf.mxu0
        %v2628 = vadd.f32 0.0, %v2627
        %v2629 = vpop.f32.mrf.mxu0
        %2630 = vmatprep.mubr.f32.mxu0 0.0
        %2631 = vmatmul.mubr.f32.gmra.mxu0 %v2487
        %v2632 = vpop.f32.mrf.mxu0
        %v2633 = vadd.f32 0.0, %v2632
        %v2634 = vpop.f32.mrf.mxu0
        %2635 = vmatprep.mubr.f32.mxu0 0.0
        %2636 = vmatmul.mubr.f32.gmra.mxu0 %v2489
        %v2637 = vpop.f32.mrf.mxu0
        %v2638 = vadd.f32 0.0, %v2637
        %v2639 = vpop.f32.mrf.mxu0
        %2640 = vmatprep.mubr.f32.mxu0 0.0
        %2641 = vmatmul.mubr.f32.gmra.mxu0 %v2491
        %v2642 = vpop.f32.mrf.mxu0
        %v2643 = vadd.f32 0.0, %v2642
        %v2644 = vpop.f32.mrf.mxu0
        %2645 = vmatprep.mubr.f32.mxu0 0.0
        %2646 = vmatmul.mubr.f32.gmra.mxu0 %v2493
        %v2647 = vpop.f32.mrf.mxu0
        %v2648 = vadd.f32 0.0, %v2647
        %v2649 = vpop.f32.mrf.mxu0
        %2650 = vmatprep.mubr.f32.mxu0 0.0
        %2651 = vmatmul.mubr.f32.gmra.mxu0 %v2495
        %v2652 = vpop.f32.mrf.mxu0
        %v2653 = vadd.f32 0.0, %v2652
        %v2654 = vpop.f32.mrf.mxu0
        %2655 = vmatprep.mubr.f32.mxu0 0.0
        %2656 = vmatmul.mubr.f32.gmra.mxu0 %v2497
        %v2657 = vpop.f32.mrf.mxu0
        %v2658 = vadd.f32 0.0, %v2657
        %v2659 = vpop.f32.mrf.mxu0
        %2660 = vmatprep.mubr.f32.mxu0 0.0
        %2661 = vmatmul.mubr.f32.gmra.mxu0 %v2499
        %v2662 = vpop.f32.mrf.mxu0
        %v2663 = vadd.f32 0.0, %v2662
        %v2664 = vpop.f32.mrf.mxu0
        %2665 = vmatprep.mubr.f32.mxu0 0.0
        %2666 = vmatmul.mubr.f32.gmra.mxu0 %v2501
        %v2667 = vpop.f32.mrf.mxu0
        %v2668 = vadd.f32 0.0, %v2667
        %v2669 = vpop.f32.mrf.mxu0
        %2670 = vmatprep.mubr.f32.mxu0 0.0
        %2671 = vmatmul.mubr.f32.gmra.mxu0 %v2503
        %v2672 = vpop.f32.mrf.mxu0
        %v2673 = vadd.f32 0.0, %v2672
        %v2674 = vpop.f32.mrf.mxu0
        %2675 = vmatprep.mubr.f32.mxu0 0.0
        %2676 = vmatmul.mubr.f32.gmra.mxu0 %v2505
        %v2677 = vpop.f32.mrf.mxu0
        %v2678 = vadd.f32 0.0, %v2677
        %v2679 = vpop.f32.mrf.mxu0
        %2680 = vmatprep.mubr.f32.mxu0 0.0
        %2681 = vmatmul.mubr.f32.gmra.mxu0 %v2507
        %v2682 = vpop.f32.mrf.mxu0
        %v2683 = vadd.f32 0.0, %v2682
        %v2684 = vpop.f32.mrf.mxu0
        %2685 = vdwg.mxu0
        %v2686 = vmul.f32 %v2608, 0.35355338
        %v2687 = vmul.f32 %v2613, 0.35355338
        %v2688 = vmul.f32 %v2618, 0.35355338
        %v2689 = vmul.f32 %v2623, 0.35355338
        %v2690 = vmul.f32 %v2628, 0.35355338
        %v2691 = vmul.f32 %v2633, 0.35355338
        %v2692 = vmul.f32 %v2638, 0.35355338
        %v2693 = vmul.f32 %v2643, 0.35355338
        %v2694 = vmul.f32 %v2648, 0.35355338
        %v2695 = vmul.f32 %v2653, 0.35355338
        %v2696 = vmul.f32 %v2658, 0.35355338
        %v2697 = vmul.f32 %v2663, 0.35355338
        %v2698 = vmul.f32 %v2668, 0.35355338
        %v2699 = vmul.f32 %v2673, 0.35355338
        %v2700 = vmul.f32 %v2678, 0.35355338
        %v2701 = vmul.f32 %v2683, 0.35355338
        %s2702 = scalar_lea.vmem [#allocation2], 384
        %v2703 = vld [vmem:[%s2702] sm:$0xff]
        %v2704 = vld [vmem:[%s2702 + $0x8] sm:$0xff]
        %v2705 = vld [vmem:[%s2702 + $0x10] sm:$0xff]
        %v2706 = vld [vmem:[%s2702 + $0x18] sm:$0xff]
        %v2707 = vld [vmem:[%s2702 + $0x20] sm:$0xff]
        %v2708 = vld [vmem:[%s2702 + $0x28] sm:$0xff]
        %v2709 = vld [vmem:[%s2702 + $0x30] sm:$0xff]
        %v2710 = vld [vmem:[%s2702 + $0x38] sm:$0xff]
        %v2711 = vld [vmem:[%s2702 + $0x40] sm:$0xff]
        %v2712 = vld [vmem:[%s2702 + $0x48] sm:$0xff]
        %v2713 = vld [vmem:[%s2702 + $0x50] sm:$0xff]
        %v2714 = vld [vmem:[%s2702 + $0x58] sm:$0xff]
        %v2715 = vld [vmem:[%s2702 + $0x60] sm:$0xff]
        %v2716 = vld [vmem:[%s2702 + $0x68] sm:$0xff]
        %v2717 = vld [vmem:[%s2702 + $0x70] sm:$0xff]
        %v2718 = vld [vmem:[%s2702 + $0x78] sm:$0xff]
        %v2719 = vadd.f32 %v2686, %v2703
        %v2720 = vadd.f32 %v2687, %v2704
        %v2721 = vadd.f32 %v2688, %v2705
        %v2722 = vadd.f32 %v2689, %v2706
        %v2723 = vadd.f32 %v2690, %v2707
        %v2724 = vadd.f32 %v2691, %v2708
        %v2725 = vadd.f32 %v2692, %v2709
        %v2726 = vadd.f32 %v2693, %v2710
        %v2727 = vadd.f32 %v2694, %v2711
        %v2728 = vadd.f32 %v2695, %v2712
        %v2729 = vadd.f32 %v2696, %v2713
        %v2730 = vadd.f32 %v2697, %v2714
        %v2731 = vadd.f32 %v2698, %v2715
        %v2732 = vadd.f32 %v2699, %v2716
        %v2733 = vadd.f32 %v2700, %v2717
        %v2734 = vadd.f32 %v2701, %v2718
        %2735 = vmax.xlane.f32.xlu0 %v2719
        %v2736 = vpop.xlane.xlu0 %2735
        %2737 = vmax.xlane.f32.xlu0 %v2720
        %v2738 = vpop.xlane.xlu0 %2737
        %2739 = vmax.xlane.f32.xlu0 %v2721
        %v2740 = vpop.xlane.xlu0 %2739
        %2741 = vmax.xlane.f32.xlu0 %v2722
        %v2742 = vpop.xlane.xlu0 %2741
        %2743 = vmax.xlane.f32.xlu0 %v2723
        %v2744 = vpop.xlane.xlu0 %2743
        %2745 = vmax.xlane.f32.xlu0 %v2724
        %v2746 = vpop.xlane.xlu0 %2745
        %2747 = vmax.xlane.f32.xlu0 %v2725
        %v2748 = vpop.xlane.xlu0 %2747
        %2749 = vmax.xlane.f32.xlu0 %v2726
        %v2750 = vpop.xlane.xlu0 %2749
        %2751 = vmax.xlane.f32.xlu0 %v2727
        %v2752 = vpop.xlane.xlu0 %2751
        %2753 = vmax.xlane.f32.xlu0 %v2728
        %v2754 = vpop.xlane.xlu0 %2753
        %2755 = vmax.xlane.f32.xlu0 %v2729
        %v2756 = vpop.xlane.xlu0 %2755
        %2757 = vmax.xlane.f32.xlu0 %v2730
        %v2758 = vpop.xlane.xlu0 %2757
        %2759 = vmax.xlane.f32.xlu0 %v2731
        %v2760 = vpop.xlane.xlu0 %2759
        %2761 = vmax.xlane.f32.xlu0 %v2732
        %v2762 = vpop.xlane.xlu0 %2761
        %2763 = vmax.xlane.f32.xlu0 %v2733
        %v2764 = vpop.xlane.xlu0 %2763
        %2765 = vmax.xlane.f32.xlu0 %v2734
        %v2766 = vpop.xlane.xlu0 %2765
        %v2767 = vsub.f32 %v2719, %v2736
        %v2768 = vsub.f32 %v2720, %v2738
        %v2769 = vsub.f32 %v2721, %v2740
        %v2770 = vsub.f32 %v2722, %v2742
        %v2771 = vsub.f32 %v2723, %v2744
        %v2772 = vsub.f32 %v2724, %v2746
        %v2773 = vsub.f32 %v2725, %v2748
        %v2774 = vsub.f32 %v2726, %v2750
        %v2775 = vsub.f32 %v2727, %v2752
        %v2776 = vsub.f32 %v2728, %v2754
        %v2777 = vsub.f32 %v2729, %v2756
        %v2778 = vsub.f32 %v2730, %v2758
        %v2779 = vsub.f32 %v2731, %v2760
        %v2780 = vsub.f32 %v2732, %v2762
        %v2781 = vsub.f32 %v2733, %v2764
        %v2782 = vsub.f32 %v2734, %v2766
        %v2783 = vmul.f32 %v2767, 1.442695
        %v2784 = vpow.pop %v2783
        %v2785 = vmul.f32 %v2768, 1.442695
        %v2786 = vpow.pop %v2785
        %v2787 = vmul.f32 %v2769, 1.442695
        %v2788 = vpow.pop %v2787
        %v2789 = vmul.f32 %v2770, 1.442695
        %v2790 = vpow.pop %v2789
        %v2791 = vmul.f32 %v2771, 1.442695
        %v2792 = vpow.pop %v2791
        %v2793 = vmul.f32 %v2772, 1.442695
        %v2794 = vpow.pop %v2793
        %v2795 = vmul.f32 %v2773, 1.442695
        %v2796 = vpow.pop %v2795
        %v2797 = vmul.f32 %v2774, 1.442695
        %v2798 = vpow.pop %v2797
        %v2799 = vmul.f32 %v2775, 1.442695
        %v2800 = vpow.pop %v2799
        %v2801 = vmul.f32 %v2776, 1.442695
        %v2802 = vpow.pop %v2801
        %v2803 = vmul.f32 %v2777, 1.442695
        %v2804 = vpow.pop %v2803
        %v2805 = vmul.f32 %v2778, 1.442695
        %v2806 = vpow.pop %v2805
        %v2807 = vmul.f32 %v2779, 1.442695
        %v2808 = vpow.pop %v2807
        %v2809 = vmul.f32 %v2780, 1.442695
        %v2810 = vpow.pop %v2809
        %v2811 = vmul.f32 %v2781, 1.442695
        %v2812 = vpow.pop %v2811
        %v2813 = vmul.f32 %v2782, 1.442695
        %v2814 = vpow.pop %v2813
        %2815 = vadd.xlane.f32.xlu0 %v2784
        %v2816 = vpop.xlane.xlu0 %2815
        %2817 = vadd.xlane.f32.xlu0 %v2786
        %v2818 = vpop.xlane.xlu0 %2817
        %2819 = vadd.xlane.f32.xlu0 %v2788
        %v2820 = vpop.xlane.xlu0 %2819
        %2821 = vadd.xlane.f32.xlu0 %v2790
        %v2822 = vpop.xlane.xlu0 %2821
        %2823 = vadd.xlane.f32.xlu0 %v2792
        %v2824 = vpop.xlane.xlu0 %2823
        %2825 = vadd.xlane.f32.xlu0 %v2794
        %v2826 = vpop.xlane.xlu0 %2825
        %2827 = vadd.xlane.f32.xlu0 %v2796
        %v2828 = vpop.xlane.xlu0 %2827
        %2829 = vadd.xlane.f32.xlu0 %v2798
        %v2830 = vpop.xlane.xlu0 %2829
        %2831 = vadd.xlane.f32.xlu0 %v2800
        %v2832 = vpop.xlane.xlu0 %2831
        %2833 = vadd.xlane.f32.xlu0 %v2802
        %v2834 = vpop.xlane.xlu0 %2833
        %2835 = vadd.xlane.f32.xlu0 %v2804
        %v2836 = vpop.xlane.xlu0 %2835
        %2837 = vadd.xlane.f32.xlu0 %v2806
        %v2838 = vpop.xlane.xlu0 %2837
        %2839 = vadd.xlane.f32.xlu0 %v2808
        %v2840 = vpop.xlane.xlu0 %2839
        %2841 = vadd.xlane.f32.xlu0 %v2810
        %v2842 = vpop.xlane.xlu0 %2841
        %2843 = vadd.xlane.f32.xlu0 %v2812
        %v2844 = vpop.xlane.xlu0 %2843
        %2845 = vadd.xlane.f32.xlu0 %v2814
        %v2846 = vpop.xlane.xlu0 %2845
        %v2847 = vrcp.pop %v2816
        %v2848 = vrcp.pop %v2818
        %v2849 = vrcp.pop %v2820
        %v2850 = vrcp.pop %v2822
        %v2851 = vrcp.pop %v2824
        %v2852 = vrcp.pop %v2826
        %v2853 = vrcp.pop %v2828
        %v2854 = vrcp.pop %v2830
        %v2855 = vrcp.pop %v2832
        %v2856 = vrcp.pop %v2834
        %v2857 = vrcp.pop %v2836
        %v2858 = vrcp.pop %v2838
        %v2859 = vrcp.pop %v2840
        %v2860 = vrcp.pop %v2842
        %v2861 = vrcp.pop %v2844
        %v2862 = vrcp.pop %v2846
        %v2863 = vmul.f32 %v2784, %v2847
        %v2864 = vmul.f32 %v2786, %v2848
        %v2865 = vmul.f32 %v2788, %v2849
        %v2866 = vmul.f32 %v2790, %v2850
        %v2867 = vmul.f32 %v2792, %v2851
        %v2868 = vmul.f32 %v2794, %v2852
        %v2869 = vmul.f32 %v2796, %v2853
        %v2870 = vmul.f32 %v2798, %v2854
        %v2871 = vmul.f32 %v2800, %v2855
        %v2872 = vmul.f32 %v2802, %v2856
        %v2873 = vmul.f32 %v2804, %v2857
        %v2874 = vmul.f32 %v2806, %v2858
        %v2875 = vmul.f32 %v2808, %v2859
        %v2876 = vmul.f32 %v2810, %v2860
        %v2877 = vmul.f32 %v2812, %v2861
        %v2878 = vmul.f32 %v2814, %v2862
        %2879 = vrot.lane.b32.xlu0 %v2381, 40
        %v2880 = vpop.permute.xlu0 %2879
        %2881 = vrot.lane.b32.xlu0 %v2382, 40
        %v2882 = vpop.permute.xlu0 %2881
        %2883 = vrot.lane.b32.xlu0 %v2383, 40
        %v2884 = vpop.permute.xlu0 %2883
        %2885 = vrot.lane.b32.xlu0 %v2384, 40
        %v2886 = vpop.permute.xlu0 %2885
        %2887 = vrot.lane.b32.xlu0 %v2385, 40
        %v2888 = vpop.permute.xlu0 %2887
        %2889 = vrot.lane.b32.xlu0 %v2386, 40
        %v2890 = vpop.permute.xlu0 %2889
        %2891 = vrot.lane.b32.xlu0 %v2387, 40
        %v2892 = vpop.permute.xlu0 %2891
        %2893 = vrot.lane.b32.xlu0 %v2388, 40
        %v2894 = vpop.permute.xlu0 %2893
        %2895 = vrot.lane.b32.xlu0 %v2389, 40
        %v2896 = vpop.permute.xlu0 %2895
        %2897 = vrot.lane.b32.xlu0 %v2390, 40
        %v2898 = vpop.permute.xlu0 %2897
        %2899 = vrot.lane.b32.xlu0 %v2391, 40
        %v2900 = vpop.permute.xlu0 %2899
        %2901 = vrot.lane.b32.xlu0 %v2392, 40
        %v2902 = vpop.permute.xlu0 %2901
        %2903 = vrot.lane.b32.xlu0 %v2393, 40
        %v2904 = vpop.permute.xlu0 %2903
        %2905 = vrot.lane.b32.xlu0 %v2394, 40
        %v2906 = vpop.permute.xlu0 %2905
        %2907 = vrot.lane.b32.xlu0 %v2395, 40
        %v2908 = vpop.permute.xlu0 %2907
        %2909 = vrot.lane.b32.xlu0 %v2396, 40
        %v2910 = vpop.permute.xlu0 %2909
        %2927 = vmatprep.subr.mxu0 0.0
        %2928 = vmatpush1.msra.mxu0 %v2910
        %2929 = vmatprep.subr.mxu0 0.0
        %2930 = vmatpush1.msra.mxu0 %v2908
        %2931 = vmatprep.subr.mxu0 0.0
        %2932 = vmatpush1.msra.mxu0 %v2906
        %2933 = vmatprep.subr.mxu0 0.0
        %2934 = vmatpush1.msra.mxu0 %v2904
        %2935 = vmatprep.subr.mxu0 0.0
        %2936 = vmatpush1.msra.mxu0 %v2902
        %2937 = vmatprep.subr.mxu0 0.0
        %2938 = vmatpush1.msra.mxu0 %v2900
        %2939 = vmatprep.subr.mxu0 0.0
        %2940 = vmatpush1.msra.mxu0 %v2898
        %2941 = vmatprep.subr.mxu0 0.0
        %2942 = vmatpush1.msra.mxu0 %v2896
        %2943 = vmatprep.subr.mxu0 0.0
        %2944 = vmatpush1.msra.mxu0 %v2894
        %2945 = vmatprep.subr.mxu0 0.0
        %2946 = vmatpush1.msra.mxu0 %v2892
        %2947 = vmatprep.subr.mxu0 0.0
        %2948 = vmatpush1.msra.mxu0 %v2890
        %2949 = vmatprep.subr.mxu0 0.0
        %2950 = vmatpush1.msra.mxu0 %v2888
        %2951 = vmatprep.subr.mxu0 0.0
        %2952 = vmatpush1.msra.mxu0 %v2886
        %2953 = vmatprep.subr.mxu0 0.0
        %2954 = vmatpush1.msra.mxu0 %v2884
        %2955 = vmatprep.subr.mxu0 0.0
        %2956 = vmatpush1.msra.mxu0 %v2882
        %2957 = vmatprep.subr.mxu0 0.0
        %2958 = vmatpush1.msra.mxu0 %v2880
        %2959 = vmatprep.subr.mxu0 0.0
        %2960 = vmatpush2.msra.mxu0 0.0
        %2961 = vmatprep.subr.mxu0 0.0
        %2962 = vmatpush2.msra.mxu0 0.0
        %2963 = vmatprep.subr.mxu0 0.0
        %2964 = vmatpush2.msra.mxu0 0.0
        %2965 = vmatprep.subr.mxu0 0.0
        %2966 = vmatpush2.msra.mxu0 0.0
        %2967 = vmatprep.subr.mxu0 0.0
        %2968 = vmatpush2.msra.mxu0 0.0
        %2969 = vmatprep.subr.mxu0 0.0
        %2970 = vmatpush2.msra.mxu0 0.0
        %2971 = vmatprep.subr.mxu0 0.0
        %2972 = vmatpush2.msra.mxu0 0.0
        %2973 = vmatprep.subr.mxu0 0.0
        %2974 = vmatpush2.msra.mxu0 0.0
        %2975 = vmatprep.subr.mxu0 0.0
        %2976 = vmatpush2.msra.mxu0 0.0
        %2977 = vmatprep.subr.mxu0 0.0
        %2978 = vmatpush2.msra.mxu0 0.0
        %2979 = vmatprep.subr.mxu0 0.0
        %2980 = vmatpush2.msra.mxu0 0.0
        %2981 = vmatprep.subr.mxu0 0.0
        %2982 = vmatpush2.msra.mxu0 0.0
        %2983 = vmatprep.subr.mxu0 0.0
        %2984 = vmatpush2.msra.mxu0 0.0
        %2985 = vmatprep.subr.mxu0 0.0
        %2986 = vmatpush2.msra.mxu0 0.0
        %2987 = vmatprep.subr.mxu0 0.0
        %2988 = vmatpush2.msra.mxu0 0.0
        %2989 = vmatprep.subr.mxu0 0.0
        %2990 = vmatpush2.msra.mxu0 0.0
        %2991 = vmatprep.mubr.f32.mxu0 0.0
        %2992 = vmatmul.mubr.f32.gmra.mxu0 %v2863
        %v2993 = vpop.f32.mrf.mxu0
        %v2994 = vadd.f32 0.0, %v2993
        %v2995 = vpop.f32.mrf.mxu0
        %2996 = vmatprep.mubr.f32.mxu0 0.0
        %2997 = vmatmul.mubr.f32.gmra.mxu0 %v2864
        %v2998 = vpop.f32.mrf.mxu0
        %v2999 = vadd.f32 0.0, %v2998
        %v3000 = vpop.f32.mrf.mxu0
        %3001 = vmatprep.mubr.f32.mxu0 0.0
        %3002 = vmatmul.mubr.f32.gmra.mxu0 %v2865
        %v3003 = vpop.f32.mrf.mxu0
        %v3004 = vadd.f32 0.0, %v3003
        %v3005 = vpop.f32.mrf.mxu0
        %3006 = vmatprep.mubr.f32.mxu0 0.0
        %3007 = vmatmul.mubr.f32.gmra.mxu0 %v2866
        %v3008 = vpop.f32.mrf.mxu0
        %v3009 = vadd.f32 0.0, %v3008
        %v3010 = vpop.f32.mrf.mxu0
        %3011 = vmatprep.mubr.f32.mxu0 0.0
        %3012 = vmatmul.mubr.f32.gmra.mxu0 %v2867
        %v3013 = vpop.f32.mrf.mxu0
        %v3014 = vadd.f32 0.0, %v3013
        %v3015 = vpop.f32.mrf.mxu0
        %3016 = vmatprep.mubr.f32.mxu0 0.0
        %3017 = vmatmul.mubr.f32.gmra.mxu0 %v2868
        %v3018 = vpop.f32.mrf.mxu0
        %v3019 = vadd.f32 0.0, %v3018
        %v3020 = vpop.f32.mrf.mxu0
        %3021 = vmatprep.mubr.f32.mxu0 0.0
        %3022 = vmatmul.mubr.f32.gmra.mxu0 %v2869
        %v3023 = vpop.f32.mrf.mxu0
        %v3024 = vadd.f32 0.0, %v3023
        %v3025 = vpop.f32.mrf.mxu0
        %3026 = vmatprep.mubr.f32.mxu0 0.0
        %3027 = vmatmul.mubr.f32.gmra.mxu0 %v2870
        %v3028 = vpop.f32.mrf.mxu0
        %v3029 = vadd.f32 0.0, %v3028
        %v3030 = vpop.f32.mrf.mxu0
        %3031 = vmatprep.mubr.f32.mxu0 0.0
        %3032 = vmatmul.mubr.f32.gmra.mxu0 %v2871
        %v3033 = vpop.f32.mrf.mxu0
        %v3034 = vadd.f32 0.0, %v3033
        %v3035 = vpop.f32.mrf.mxu0
        %3036 = vmatprep.mubr.f32.mxu0 0.0
        %3037 = vmatmul.mubr.f32.gmra.mxu0 %v2872
        %v3038 = vpop.f32.mrf.mxu0
        %v3039 = vadd.f32 0.0, %v3038
        %v3040 = vpop.f32.mrf.mxu0
        %3041 = vmatprep.mubr.f32.mxu0 0.0
        %3042 = vmatmul.mubr.f32.gmra.mxu0 %v2873
        %v3043 = vpop.f32.mrf.mxu0
        %v3044 = vadd.f32 0.0, %v3043
        %v3045 = vpop.f32.mrf.mxu0
        %3046 = vmatprep.mubr.f32.mxu0 0.0
        %3047 = vmatmul.mubr.f32.gmra.mxu0 %v2874
        %v3048 = vpop.f32.mrf.mxu0
        %v3049 = vadd.f32 0.0, %v3048
        %v3050 = vpop.f32.mrf.mxu0
        %3051 = vmatprep.mubr.f32.mxu0 0.0
        %3052 = vmatmul.mubr.f32.gmra.mxu0 %v2875
        %v3053 = vpop.f32.mrf.mxu0
        %v3054 = vadd.f32 0.0, %v3053
        %v3055 = vpop.f32.mrf.mxu0
        %3056 = vmatprep.mubr.f32.mxu0 0.0
        %3057 = vmatmul.mubr.f32.gmra.mxu0 %v2876
        %v3058 = vpop.f32.mrf.mxu0
        %v3059 = vadd.f32 0.0, %v3058
        %v3060 = vpop.f32.mrf.mxu0
        %3061 = vmatprep.mubr.f32.mxu0 0.0
        %3062 = vmatmul.mubr.f32.gmra.mxu0 %v2877
        %v3063 = vpop.f32.mrf.mxu0
        %v3064 = vadd.f32 0.0, %v3063
        %v3065 = vpop.f32.mrf.mxu0
        %3066 = vmatprep.mubr.f32.mxu0 0.0
        %3067 = vmatmul.mubr.f32.gmra.mxu0 %v2878
        %v3068 = vpop.f32.mrf.mxu0
        %v3069 = vadd.f32 0.0, %v3068
        %v3070 = vpop.f32.mrf.mxu0
        %3071 = vdwg.mxu0
        %3088 = vrot.lane.b32.xlu0 %v2994, 24
        %v3089 = vpop.permute.xlu0 %3088
        %3090 = vrot.lane.b32.xlu0 %v2999, 24
        %v3091 = vpop.permute.xlu0 %3090
        %3092 = vrot.lane.b32.xlu0 %v3004, 24
        %v3093 = vpop.permute.xlu0 %3092
        %3094 = vrot.lane.b32.xlu0 %v3009, 24
        %v3095 = vpop.permute.xlu0 %3094
        %3096 = vrot.lane.b32.xlu0 %v3014, 24
        %v3097 = vpop.permute.xlu0 %3096
        %3098 = vrot.lane.b32.xlu0 %v3019, 24
        %v3099 = vpop.permute.xlu0 %3098
        %3100 = vrot.lane.b32.xlu0 %v3024, 24
        %v3101 = vpop.permute.xlu0 %3100
        %3102 = vrot.lane.b32.xlu0 %v3029, 24
        %v3103 = vpop.permute.xlu0 %3102
        %3104 = vrot.lane.b32.xlu0 %v3034, 24
        %v3105 = vpop.permute.xlu0 %3104
        %3106 = vrot.lane.b32.xlu0 %v3039, 24
        %v3107 = vpop.permute.xlu0 %3106
        %3108 = vrot.lane.b32.xlu0 %v3044, 24
        %v3109 = vpop.permute.xlu0 %3108
        %3110 = vrot.lane.b32.xlu0 %v3049, 24
        %v3111 = vpop.permute.xlu0 %3110
        %3112 = vrot.lane.b32.xlu0 %v3054, 24
        %v3113 = vpop.permute.xlu0 %3112
        %3114 = vrot.lane.b32.xlu0 %v3059, 24
        %v3115 = vpop.permute.xlu0 %3114
        %3116 = vrot.lane.b32.xlu0 %v3064, 24
        %v3117 = vpop.permute.xlu0 %3116
        %3118 = vrot.lane.b32.xlu0 %v3069, 24
        %v3119 = vpop.permute.xlu0 %3118
        %vm3136 = vcmask 261312
        %3137 = vst.msk [vmem:[%s160] sm:$0xff] %vm3136, %v3089
        %3138 = vst.msk [vmem:[%s160 + $0x8] sm:$0xff] %vm3136, %v3091
        %3139 = vst.msk [vmem:[%s160 + $0x10] sm:$0xff] %vm3136, %v3093
        %3140 = vst.msk [vmem:[%s160 + $0x18] sm:$0xff] %vm3136, %v3095
        %3141 = vst.msk [vmem:[%s160 + $0x20] sm:$0xff] %vm3136, %v3097
        %3142 = vst.msk [vmem:[%s160 + $0x28] sm:$0xff] %vm3136, %v3099
        %3143 = vst.msk [vmem:[%s160 + $0x30] sm:$0xff] %vm3136, %v3101
        %3144 = vst.msk [vmem:[%s160 + $0x38] sm:$0xff] %vm3136, %v3103
        %3145 = vst.msk [vmem:[%s160 + $0x40] sm:$0xff] %vm3136, %v3105
        %3146 = vst.msk [vmem:[%s160 + $0x48] sm:$0xff] %vm3136, %v3107
        %3147 = vst.msk [vmem:[%s160 + $0x50] sm:$0xff] %vm3136, %v3109
        %3148 = vst.msk [vmem:[%s160 + $0x58] sm:$0xff] %vm3136, %v3111
        %3149 = vst.msk [vmem:[%s160 + $0x60] sm:$0xff] %vm3136, %v3113
        %3150 = vst.msk [vmem:[%s160 + $0x68] sm:$0xff] %vm3136, %v3115
        %3151 = vst.msk [vmem:[%s160 + $0x70] sm:$0xff] %vm3136, %v3117
        %3152 = vst.msk [vmem:[%s160 + $0x78] sm:$0xff] %vm3136, %v3119
        %s3153 = smul.u32 16, %s14
        %p3154 = scmp.lt.s32.totalorder %s3153, 31
        %s3155 = scalar_select %p3154, %s3153, 31
        %s3156 = smul.addr %s3155, 8
        %s3157 = scalar_lea.vmem %s2, %s3156
        // Predicated region
        $region33: #{tpu_custom_call.1} parent=27 // pred_check
          %p3158 = pneg %p79
        $region34: #{tpu_custom_call.1} parent=27 // pred_check_branch
          %3160 = sbr.rel (%p3158) target = $region36
        $region35: #{tpu_custom_call.1} parent=27 // pred_region
          %s3161 = smul.u32 16, %s14
        $region36: #{tpu_custom_call.1} parent=27 // pred_fallthru
          _
      $region28: #{tpu_custom_call.1} parent=5 // pred_fallthru
        _
      %p3162 = scmp.le.s32.totalorder 2, %s9
      // Predicated region
      $region37: #{tpu_custom_call.1} parent=5 // pred_check
        %p3163 = pneg %p3162
      $region38: #{tpu_custom_call.1} parent=5 // pred_check_branch
        %3165 = sbr.rel (%p3163) target = $region40
      $region39: #{tpu_custom_call.1} parent=5 // pred_region
        %s3166 = ssub.s32 %s9, 2
        // Predicated region
        $region41: #{tpu_custom_call.1} parent=39 // pred_check
          %p3167 = pneg %p85
        $region42: #{tpu_custom_call.1} parent=39 // pred_check_branch
          %3169 = sbr.rel (%p3167) target = $region44
        $region43: #{tpu_custom_call.1} parent=39 // pred_region
          %s3170 = smul.u32 16, %s15
          %p3171 = scmp.lt.s32.totalorder %s3170, 31
          %s3172 = scalar_select %p3171, %s3170, 31
          %s3173 = smul.addr %s3172, 8
          %s3174 = scalar_lea.vmem %s2, %s3173
        $region44: #{tpu_custom_call.1} parent=39 // pred_fallthru
          _
      $region40: #{tpu_custom_call.1} parent=5 // pred_fallthru
        _
    $region6: #{tpu_custom_call.1} parent=1 // loop_footer
      %s13 = sadd.s32 1, %s9
    $region7: #{tpu_custom_call.1} parent=1 // loop_footer_branch
      %8 = sbr.rel target = $region3
    $region8: #{tpu_custom_call.1} parent=1 // loop_exit
      _
    %3175 = vsyncpa [#allocation3], 1
    %s3176 = scalar_lea.sflag [#allocation3], 1
    %3177 = vsyncpa %s3176, 1

</llo_original>
